<compile_context>
chip_gen: v7x
topology: tpu7x:2x2x1
jax: 0.10.0
libtpu: 0.0.40
codegen_flags: <defaults>
</compile_context>

<pallas_src>
import numpy as np
import jax
import jax.numpy as jnp
from jax.experimental import pallas as pl
from jax.experimental.pallas import tpu as pltpu

# Direction order groups equal logits-base slabs adjacently (base = 0,0,1,1,2,2).
# slabs: 0 = image, 1 = text, 2 = cf(item)
_DIR_NAMES = ("t2i", "d2i", "i2t", "d2t", "i2d", "t2d")
_SRC_SEL = (1, 2, 0, 2, 0, 1)
_BASE_SEL = (0, 0, 1, 1, 2, 2)
_FEAT_IDX = {n: i for i, n in enumerate(_DIR_NAMES)}


def _round_up(x, m):
    return ((x + m - 1) // m) * m


# ----------------------------------------------------------------------------
# Pallas kernel: one (direction k, row tile i, column chunk j) grid step.
# ----------------------------------------------------------------------------
def _ila_kernel(ssel_ref, bsel_ref,                       # scalar prefetch
                src_ref, w_ref, baseT_ref, invt_ref, mcol_ref,
                ce_ref, feats_ref,
                fns_sc, m_sc, l_sc, diag_sc):
    del ssel_ref, bsel_ref                                # used only by index_maps
    j = pl.program_id(2)
    n_j = pl.num_programs(2)
    tile_m, _ = src_ref.shape
    tile_n = baseT_ref.shape[1]

    # --- prologue (once per row tile): projection + renorm -------------------
    @pl.when(j == 0)
    def _():
        inv_temp = invt_ref[0]                            # SMEM f32 (1/temp)
        x = src_ref[...].astype(jnp.float32)              # (TM, Dp)
        # residual linear projection x @ W^T + x : bf16 MXU operands, f32 acc
        f = jnp.dot(src_ref[...], w_ref[...],
                    preferred_element_type=jnp.float32) + x
        # row re-normalisation via rsqrt (EUP); guard keeps padded rows finite
        inv_norm = jax.lax.rsqrt(
            jnp.maximum(jnp.sum(f * f, axis=1, keepdims=True), 1e-24))
        fn = f * inv_norm
        feats_ref[...] = fn.astype(jnp.bfloat16)
        # fold 1/temp into the (TM, Dp) MXU operand once, instead of scaling
        # every (TM, TN) logits chunk
        fns_sc[...] = (fn * inv_temp).astype(jnp.bfloat16)
        m_sc[...] = jnp.full_like(m_sc, -1e30)
        l_sc[...] = jnp.zeros_like(l_sc)
        diag_sc[...] = jnp.zeros_like(diag_sc)

    # --- one column chunk of the logits: online (flash-style) logsumexp ------
    logits = jnp.dot(fns_sc[...], baseT_ref[...],
                     preferred_element_type=jnp.float32)  # (TM, TN) f32
    col_ids = j * tile_n + jax.lax.broadcasted_iota(
        jnp.int32, (tile_m, tile_n), 1)
    row_ids = (pl.program_id(1) * tile_m
               + jax.lax.broadcasted_iota(jnp.int32, (tile_m, tile_n), 0))
    logits = jnp.where(col_ids < mcol_ref[0], logits, -1e30)   # padded columns

    chunk_max = jnp.max(logits, axis=1, keepdims=True)
    m_new = jnp.maximum(m_sc[...], chunk_max)
    alpha = jnp.exp(m_sc[...] - m_new)
    l_sc[...] = alpha * l_sc[...] + jnp.sum(jnp.exp(logits - m_new),
                                            axis=1, keepdims=True)
    m_sc[...] = m_new
    # diagonal (target-class) logit for row r lives at global column r: extract
    # it from this chunk's logits (exactly one match per row over all chunks)
    diag_sc[...] += jnp.sum(jnp.where(col_ids == row_ids, logits, 0.0),
                            axis=1, keepdims=True)

    # --- epilogue (last chunk): per-row cross-entropy ------------------------
    @pl.when(j == n_j - 1)
    def _():
        ce_ref[...] = jnp.log(l_sc[...]) + m_sc[...] - diag_sc[...]


def _run_ila_kernel(srcs_bf16, w_bf16, basesT_bf16, inv_temp_arr, m_arr,
                    tile_m, tile_n):
    _, Mp, Dp = srcs_bf16.shape
    n_i = Mp // tile_m
    n_j = Mp // tile_n
    ssel = jnp.asarray(_SRC_SEL, jnp.int32)
    bsel = jnp.asarray(_BASE_SEL, jnp.int32)

    grid_spec = pltpu.PrefetchScalarGridSpec(
        num_scalar_prefetch=2,
        grid=(6, n_i, n_j),                               # j innermost (reduction)
        in_specs=[
            pl.BlockSpec((None, tile_m, Dp),
                         lambda k, i, j, ss, bs: (ss[k], i, 0)),   # src tile (bf16)
            pl.BlockSpec((None, Dp, Dp),
                         lambda k, i, j, ss, bs: (k, 0, 0)),       # W_k^T (bf16)
            pl.BlockSpec((None, Dp, tile_n),
                         lambda k, i, j, ss, bs: (bs[k], 0, j)),   # base^T chunk
            pl.BlockSpec(memory_space=pltpu.MemorySpace.SMEM),     # 1/temp f32
            pl.BlockSpec(memory_space=pltpu.MemorySpace.SMEM),     # M int32
        ],
        out_specs=(
            pl.BlockSpec((None, tile_m, 1),
                         lambda k, i, j, ss, bs: (k, i, 0)),       # per-row CE
            pl.BlockSpec((None, tile_m, Dp),
                         lambda k, i, j, ss, bs: (k, i, 0)),       # feats (bf16)
        ),
        scratch_shapes=[
            pltpu.VMEM((tile_m, Dp), jnp.bfloat16),       # fn * (1/temp) operand
            pltpu.VMEM((tile_m, 1), jnp.float32),         # running max
            pltpu.VMEM((tile_m, 1), jnp.float32),         # running exp-sum
            pltpu.VMEM((tile_m, 1), jnp.float32),         # diagonal logit
        ],
    )
    call = pl.pallas_call(
        _ila_kernel,
        out_shape=(jax.ShapeDtypeStruct((6, Mp, 1), jnp.float32),
                   jax.ShapeDtypeStruct((6, Mp, Dp), jnp.bfloat16)),
        grid_spec=grid_spec,
        compiler_params=pltpu.CompilerParams(
            # (k, i) parallel -> megacore-shardable on v7x; j is the reduction
            dimension_semantics=("parallel", "parallel", "arbitrary"),
            # explicit scoped-VMEM budget; actual per-step footprint is ~4 MiB,
            # so this leaves headroom on every generation (v7x: 64 MiB / 2 TCs)
            vmem_limit_bytes=24 * 1024 * 1024,
        ),
    )
    return call(ssel, bsel, srcs_bf16, w_bf16, basesT_bf16, inv_temp_arr, m_arr)


# Pure-JAX f32 reference of the in-kernel math (validation only).
def _ref_math(srcs_f32, w_f32, valid_cols, row_masks, inv_temp):
    hp = jax.lax.Precision.HIGHEST
    ce = jnp.float32(0.0)
    feats = []
    for k in range(6):
        x = srcs_f32[_SRC_SEL[k]]
        base = srcs_f32[_BASE_SEL[k]]
        f = jnp.dot(x, w_f32[k], precision=hp) + x
        fn = f / jnp.maximum(jnp.linalg.norm(f, axis=1, keepdims=True), 1e-12)
        feats.append(fn)
        logits = jnp.dot(fn, base.T, precision=hp) * inv_temp
        logits_m = jnp.where(valid_cols[None, :], logits, -1e30)
        lse = jax.scipy.special.logsumexp(logits_m, axis=1)
        diag = jnp.sum(fn * base, axis=1) * inv_temp
        ce = ce + jnp.sum((lse - diag) * row_masks[k])
    return ce, jnp.stack(feats)


# ----------------------------------------------------------------------------
# Parameter init (deterministic, synthetic; mimics nn.Linear(dim, dim, bias=False))
# ----------------------------------------------------------------------------
def init_params(key, dim, gamma=0.007):
    keys = jax.random.split(key, 6)
    bound = 1.0 / np.sqrt(dim)
    params = {"temp": jnp.float32(gamma)}
    for n, k in zip(_DIR_NAMES, keys):
        params[f"W_{n}"] = jax.random.uniform(
            k, (dim, dim), jnp.float32, minval=-bound, maxval=bound)
    return params


# ----------------------------------------------------------------------------
# Full forward (eager glue + Pallas hot path)
# ----------------------------------------------------------------------------
def ila_dt_loss(params, user_embeddings, item_embeddings, image_embeddings,
                text_embeddings, user_id, item_id, validate=True):
    # NOTE: validate=True recomputes an f32 reference + host sync; disable for
    # any benchmarked / production path.
    f32 = jnp.float32
    temp = jnp.clip(params["temp"], 0.001, 0.5).astype(f32)
    inv_temp = 1.0 / temp

    # --- sort / unique (data dependent; host-side glue) ----------------------
    order = jnp.argsort(item_id)
    item_sorted = item_id[order]
    user_sorted = user_id[order]
    uniq_np, remap_np, counts_np = np.unique(
        np.asarray(item_sorted), return_inverse=True, return_counts=True)
    unique_items = jnp.asarray(uniq_np, jnp.int32)
    remap = jnp.asarray(remap_np, jnp.int32)
    counts = jnp.asarray(counts_np, f32)
    M = int(uniq_np.shape[0])
    D = int(user_embeddings.shape[1])

    # --- row-normalise the embedding tables ----------------------------------
    def rownorm(x):
        return x / jnp.linalg.norm(x, axis=1, keepdims=True)

    un = rownorm(user_embeddings.astype(f32))
    itn = rownorm(item_embeddings.astype(f32))
    imn = rownorm(image_embeddings.astype(f32))
    txn = rownorm(text_embeddings.astype(f32))

    def seg_avg(s):
        return jax.ops.segment_sum(s / counts[remap], remap, num_segments=M)

    uid_scores = seg_avg(jnp.sum(un[user_sorted] * itn[item_sorted], axis=1))
    uii_scores = seg_avg(jnp.sum(un[user_sorted] * imn[item_sorted], axis=1))
    uit_scores = seg_avg(jnp.sum(un[user_sorted] * txn[item_sorted], axis=1))

    t_i = uii_scores > uit_scores
    i_t = uit_scores > uii_scores
    i_d = uid_scores > uii_scores
    d_i = uii_scores > uid_scores
    t_d = uid_scores > uit_scores
    d_t = uit_scores > uid_scores

    cf_u = itn[unique_items]
    img_u = imn[unique_items]
    txt_u = txn[unique_items]

    # --- tile / padding choices ----------------------------------------------
    Dp = _round_up(D, 128)                    # lane-dense feature dim
    if M <= 256:
        Mp = _round_up(M, 128)                # lane-dense logits N even when tiny
        tile_m = Mp
        tile_n = Mp
    else:
        # tile_m=256 keeps the logits-matmul intensity ~256 MAC/byte (above the
        # HBM roofline on v5e/v7x, ~balanced on v6e); tile_n=512 is a multiple
        # of 256 for the v6e/v7x MXU N dim.  Per-step VMEM footprint stays
        # < ~4 MiB, well inside v7x's 64 MiB (shared by 2 TCs).
        tile_m, tile_n = 256, 512
        Mp = _round_up(M, 512)

    def pad2(x):
        return jnp.pad(x, ((0, Mp - x.shape[0]), (0, Dp - x.shape[1])))

    srcs_f32 = jnp.stack([pad2(img_u), pad2(txt_u), pad2(cf_u)])      # (3,Mp,Dp)
    srcs_bf16 = srcs_f32.astype(jnp.bfloat16)
    basesT_bf16 = jnp.transpose(srcs_bf16, (0, 2, 1))                 # (3,Dp,Mp)

    # weights pre-transposed (x @ W^T, nn.Linear semantics), zero-padded to Dp
    w_f32 = jnp.stack([
        jnp.pad(params[f"W_{n}"].astype(f32).T, ((0, Dp - D), (0, Dp - D)))
        for n in _DIR_NAMES])                                         # (6,Dp,Dp)
    w_bf16 = w_f32.astype(jnp.bfloat16)

    row_masks = jnp.pad(
        jnp.stack([t_i, d_i, i_t, d_t, i_d, t_d]).astype(f32),
        ((0, 0), (0, Mp - M)))                                        # (6,Mp)
    inv_temp_arr = inv_temp.reshape(1).astype(f32)                    # SMEM scalar
    m_arr = jnp.asarray([M], jnp.int32)                               # SMEM scalar

    ce_rows, feats_p = _run_ila_kernel(srcs_bf16, w_bf16, basesT_bf16,
                                       inv_temp_arr, m_arr, tile_m, tile_n)
    ce_sum = jnp.sum(ce_rows[:, :, 0] * row_masks)
    feats = feats_p[:, :M, :D].astype(f32)                            # (6,M,D)

    if validate:
        valid_cols = jnp.arange(Mp) < M
        ce_ref, feats_ref = _ref_math(srcs_f32, w_f32, valid_cols,
                                      row_masks, inv_temp)
        np.testing.assert_allclose(np.asarray(ce_sum), np.asarray(ce_ref),
                                   rtol=5e-2, atol=1.0)
        np.testing.assert_allclose(np.asarray(feats),
                                   np.asarray(feats_ref[:, :M, :D]),
                                   rtol=2e-2, atol=2e-2)

    loss = ce_sum / M

    # --- alignment loss (cheap per-row dot products + segment sums) ----------
    u_batch = un[user_sorted]                                         # (B, D)

    def align_term(dir_name, mask, baseline):
        fmap = feats[_FEAT_IDX[dir_name]]                             # (M, D)
        pos = seg_avg(jnp.sum(u_batch * fmap[remap], axis=1))
        m = mask.astype(f32)
        cnt = jnp.sum(m)
        diff_sum = jnp.sum((pos - baseline) * m)
        return jnp.where(cnt > 0, -diff_sum / jnp.maximum(cnt, 1.0), 0.0)

    loss_align = (align_term("i2t", i_t, uii_scores) +
                  align_term("t2i", t_i, uit_scores) +
                  align_term("i2d", i_d, uii_scores) +
                  align_term("d2i", d_i, uid_scores) +
                  align_term("t2d", t_d, uit_scores) +
                  align_term("d2t", d_t, uid_scores)) / 6.0

    return loss + loss_align


# ----------------------------------------------------------------------------
if __name__ == "__main__":
    key = jax.random.PRNGKey(0)
    k1, k2, k3, k4, k5, k6, k7 = jax.random.split(key, 7)

    D = 64                 # module default dim
    num_users, num_items, B = 10, 12, 16

    user_embeddings = jax.random.normal(k1, (num_users, D), jnp.float32)
    item_embeddings = jax.random.normal(k2, (num_items, D), jnp.float32)
    image_embeddings = jax.random.normal(k3, (num_items, D), jnp.float32)
    text_embeddings = jax.random.normal(k4, (num_items, D), jnp.float32)
    user_id = jax.random.randint(k5, (B,), 0, num_users)
    item_id = jax.random.randint(k6, (B,), 0, num_items)

    params = init_params(k7, D, gamma=0.007)

    loss = ila_dt_loss(params, user_embeddings, item_embeddings,
                       image_embeddings, text_embeddings, user_id, item_id)
    loss = jax.block_until_ready(loss)
    assert np.isfinite(float(loss)), "loss is not finite"
    print("KERNEL_OK")
</pallas_src>

<mosaic_0001>
module attributes {stable_mosaic.version = 11 : i64} {
  func.func @_ila_kernel(%arg0: i32, %arg1: i32, %arg2: i32, %arg3: memref<6xi32, #tpu.memory_space<smem>>, %arg4: memref<6xi32, #tpu.memory_space<smem>>, %arg5: memref<1x128x128xbf16, #tpu.memory_space<vmem>>, %arg6: memref<1x128x128xbf16, #tpu.memory_space<vmem>>, %arg7: memref<1x128x128xbf16, #tpu.memory_space<vmem>>, %arg8: memref<1xf32, #tpu.memory_space<smem>>, %arg9: memref<1xi32, #tpu.memory_space<smem>>, %arg10: memref<1x128x1xf32, #tpu.memory_space<vmem>>, %arg11: memref<1x128x128xbf16, #tpu.memory_space<vmem>>, %arg12: memref<128x128xbf16, #tpu.memory_space<vmem>>, %arg13: memref<128x1xf32, #tpu.memory_space<vmem>>, %arg14: memref<128x1xf32, #tpu.memory_space<vmem>>, %arg15: memref<128x1xf32, #tpu.memory_space<vmem>>) attributes {dimension_semantics = [#tpu.dimension_semantics<parallel>, #tpu.dimension_semantics<parallel>, #tpu.dimension_semantics<arbitrary>], iteration_bounds = array<i64: 6, 1, 1>, scalar_prefetch = 2 : i64, scratch_operands = 4 : i64, tpu.core_type = #tpu.core_type<tc>, window_params = [{transform_indices = @transform_0, window_bounds = array<i64: 1, 128, 128>}, {transform_indices = @transform_1, window_bounds = array<i64: 1, 128, 128>}, {transform_indices = @transform_2, window_bounds = array<i64: 1, 128, 128>}, {transform_indices = @transform_3, window_bounds = array<i64: 1>}, {transform_indices = @transform_4, window_bounds = array<i64: 1>}, {transform_indices = @transform_5, window_bounds = array<i64: 1, 128, 1>}, {transform_indices = @transform_6, window_bounds = array<i64: 1, 128, 128>}]} {
    %c0_i32 = arith.constant 0 : i32
    %0 = arith.cmpi eq, %arg2, %c0_i32 : i32
    %1 = arith.extui %0 : i1 to i32
    %c0_i32_0 = arith.constant 0 : i32
    %2 = arith.cmpi ne, %1, %c0_i32_0 : i32
    scf.if %2 {
      %c0_28 = arith.constant 0 : index
      %48 = memref.load %arg8[%c0_28] : memref<1xf32, #tpu.memory_space<smem>>
      %c0_29 = arith.constant 0 : index
      %c0_30 = arith.constant 0 : index
      %c0_31 = arith.constant 0 : index
      %49 = vector.load %arg5[%c0_29, %c0_30, %c0_31] : memref<1x128x128xbf16, #tpu.memory_space<vmem>>, vector<1x128x128xbf16>
      %50 = vector.shape_cast %49 : vector<1x128x128xbf16> to vector<128x128xbf16>
      %51 = arith.extf %50 : vector<128x128xbf16> to vector<128x128xf32>
      %c0_32 = arith.constant 0 : index
      %c0_33 = arith.constant 0 : index
      %c0_34 = arith.constant 0 : index
      %52 = vector.load %arg5[%c0_32, %c0_33, %c0_34] : memref<1x128x128xbf16, #tpu.memory_space<vmem>>, vector<1x128x128xbf16>
      %53 = vector.shape_cast %52 : vector<1x128x128xbf16> to vector<128x128xbf16>
      %c0_35 = arith.constant 0 : index
      %c0_36 = arith.constant 0 : index
      %c0_37 = arith.constant 0 : index
      %54 = vector.load %arg6[%c0_35, %c0_36, %c0_37] : memref<1x128x128xbf16, #tpu.memory_space<vmem>>, vector<1x128x128xbf16>
      %55 = vector.shape_cast %54 : vector<1x128x128xbf16> to vector<128x128xbf16>
      %cst_38 = arith.constant dense<0.000000e+00> : vector<128x128xf32>
      %56 = tpu.matmul %53, %55, %cst_38 {dimension_numbers = #tpu.dot_dimension_numbers<[1], [0], [0], [1], [0, 0, 1, 1], [], []>} : vector<128x128xbf16>, vector<128x128xbf16>, vector<128x128xf32> -> vector<128x128xf32>
      %57 = arith.addf %56, %51 : vector<128x128xf32>
      %58 = arith.mulf %57, %57 : vector<128x128xf32>
      %cst_39 = arith.constant dense<0.000000e+00> : vector<128xf32>
      %59 = vector.multi_reduction <add>, %58, %cst_39 [1] : vector<128x128xf32> to vector<128xf32>
      %60 = vector.shape_cast %59 : vector<128xf32> to vector<128x1xf32>
      %cst_40 = arith.constant 1.000000e-24 : f32
      %61 = vector.broadcast %cst_40 : f32 to vector<128x1xf32>
      %62 = arith.maximumf %60, %61 : vector<128x1xf32>
      %63 = math.rsqrt %62 : vector<128x1xf32>
      %64 = vector.broadcast %63 : vector<128x1xf32> to vector<128x128xf32>
      %65 = arith.mulf %57, %64 : vector<128x128xf32>
      %66 = arith.truncf %65 : vector<128x128xf32> to vector<128x128xbf16>
      %c0_41 = arith.constant 0 : index
      %c0_42 = arith.constant 0 : index
      %c0_43 = arith.constant 0 : index
      %67 = vector.load %arg11[%c0_41, %c0_42, %c0_43] : memref<1x128x128xbf16, #tpu.memory_space<vmem>>, vector<1x128x128xbf16>
      %68 = vector.shape_cast %67 : vector<1x128x128xbf16> to vector<128x128xbf16>
      %69 = vector.shape_cast %66 : vector<128x128xbf16> to vector<1x128x128xbf16>
      tpu.vector_store %arg11[%c0_41, %c0_42, %c0_43], %69 {strides = array<i32>} : memref<1x128x128xbf16, #tpu.memory_space<vmem>>, vector<1x128x128xbf16>,
      %70 = vector.broadcast %48 : f32 to vector<128x128xf32>
      %71 = arith.mulf %65, %70 : vector<128x128xf32>
      %72 = arith.truncf %71 : vector<128x128xf32> to vector<128x128xbf16>
      %c0_44 = arith.constant 0 : index
      %c0_45 = arith.constant 0 : index
      %73 = vector.load %arg12[%c0_44, %c0_45] : memref<128x128xbf16, #tpu.memory_space<vmem>>, vector<128x128xbf16>
      tpu.vector_store %arg12[%c0_44, %c0_45], %72 {strides = array<i32>} : memref<128x128xbf16, #tpu.memory_space<vmem>>, vector<128x128xbf16>,
      %cst_46 = arith.constant -1.000000e+30 : f32
      %74 = vector.broadcast %cst_46 : f32 to vector<128x1xf32>
      %c0_47 = arith.constant 0 : index
      %c0_48 = arith.constant 0 : index
      %75 = vector.load %arg13[%c0_47, %c0_48] : memref<128x1xf32, #tpu.memory_space<vmem>>, vector<128x1xf32>
      tpu.vector_store %arg13[%c0_47, %c0_48], %74 {strides = array<i32>} : memref<128x1xf32, #tpu.memory_space<vmem>>, vector<128x1xf32>,
      %cst_49 = arith.constant 0.000000e+00 : f32
      %76 = vector.broadcast %cst_49 : f32 to vector<128x1xf32>
      %c0_50 = arith.constant 0 : index
      %c0_51 = arith.constant 0 : index
      %77 = vector.load %arg14[%c0_50, %c0_51] : memref<128x1xf32, #tpu.memory_space<vmem>>, vector<128x1xf32>
      tpu.vector_store %arg14[%c0_50, %c0_51], %76 {strides = array<i32>} : memref<128x1xf32, #tpu.memory_space<vmem>>, vector<128x1xf32>,
      %cst_52 = arith.constant 0.000000e+00 : f32
      %78 = vector.broadcast %cst_52 : f32 to vector<128x1xf32>
      %c0_53 = arith.constant 0 : index
      %c0_54 = arith.constant 0 : index
      %79 = vector.load %arg15[%c0_53, %c0_54] : memref<128x1xf32, #tpu.memory_space<vmem>>, vector<128x1xf32>
      tpu.vector_store %arg15[%c0_53, %c0_54], %78 {strides = array<i32>} : memref<128x1xf32, #tpu.memory_space<vmem>>, vector<128x1xf32>,
    } else {
    }
    %c0 = arith.constant 0 : index
    %c0_1 = arith.constant 0 : index
    %3 = vector.load %arg12[%c0, %c0_1] : memref<128x128xbf16, #tpu.memory_space<vmem>>, vector<128x128xbf16>
    %c0_2 = arith.constant 0 : index
    %c0_3 = arith.constant 0 : index
    %c0_4 = arith.constant 0 : index
    %4 = vector.load %arg7[%c0_2, %c0_3, %c0_4] : memref<1x128x128xbf16, #tpu.memory_space<vmem>>, vector<1x128x128xbf16>
    %5 = vector.shape_cast %4 : vector<1x128x128xbf16> to vector<128x128xbf16>
    %cst = arith.constant dense<0.000000e+00> : vector<128x128xf32>
    %6 = tpu.matmul %3, %5, %cst {dimension_numbers = #tpu.dot_dimension_numbers<[1], [0], [0], [1], [0, 0, 1, 1], [], []>} : vector<128x128xbf16>, vector<128x128xbf16>, vector<128x128xf32> -> vector<128x128xf32>
    %c128_i32 = arith.constant 128 : i32
    %7 = arith.muli %arg2, %c128_i32 : i32
    %8 = tpu.iota {dimensions = array<i32: 1>} : vector<128x128xi32>
    %9 = vector.broadcast %7 : i32 to vector<128x128xi32>
    %10 = arith.addi %9, %8 : vector<128x128xi32>
    %c128_i32_5 = arith.constant 128 : i32
    %11 = arith.muli %arg1, %c128_i32_5 : i32
    %12 = tpu.iota {dimensions = array<i32: 0>} : vector<128x128xi32>
    %13 = vector.broadcast %11 : i32 to vector<128x128xi32>
    %14 = arith.addi %13, %12 : vector<128x128xi32>
    %c0_6 = arith.constant 0 : index
    %15 = memref.load %arg9[%c0_6] : memref<1xi32, #tpu.memory_space<smem>>
    %16 = vector.broadcast %15 : i32 to vector<128x128xi32>
    %17 = arith.cmpi slt, %10, %16 : vector<128x128xi32>
    %cst_7 = arith.constant -1.000000e+30 : f32
    %18 = vector.broadcast %cst_7 : f32 to vector<128x128xf32>
    %19 = arith.select %17, %6, %18 : vector<128x128xi1>, vector<128x128xf32>
    %cst_8 = arith.constant dense<0xFF800000> : vector<128xf32>
    %20 = vector.multi_reduction <maximumf>, %19, %cst_8 [1] : vector<128x128xf32> to vector<128xf32>
    %21 = vector.shape_cast %20 : vector<128xf32> to vector<128x1xf32>
    %c0_9 = arith.constant 0 : index
    %c0_10 = arith.constant 0 : index
    %22 = vector.load %arg13[%c0_9, %c0_10] : memref<128x1xf32, #tpu.memory_space<vmem>>, vector<128x1xf32>
    %23 = arith.maximumf %22, %21 : vector<128x1xf32>
    %c0_11 = arith.constant 0 : index
    %c0_12 = arith.constant 0 : index
    %24 = vector.load %arg13[%c0_11, %c0_12] : memref<128x1xf32, #tpu.memory_space<vmem>>, vector<128x1xf32>
    %25 = arith.subf %24, %23 : vector<128x1xf32>
    %26 = math.exp %25 : vector<128x1xf32>
    %c0_13 = arith.constant 0 : index
    %c0_14 = arith.constant 0 : index
    %27 = vector.load %arg14[%c0_13, %c0_14] : memref<128x1xf32, #tpu.memory_space<vmem>>, vector<128x1xf32>
    %28 = arith.mulf %26, %27 : vector<128x1xf32>
    %29 = vector.broadcast %23 : vector<128x1xf32> to vector<128x128xf32>
    %30 = arith.subf %19, %29 : vector<128x128xf32>
    %31 = math.exp %30 : vector<128x128xf32>
    %cst_15 = arith.constant dense<0.000000e+00> : vector<128xf32>
    %32 = vector.multi_reduction <add>, %31, %cst_15 [1] : vector<128x128xf32> to vector<128xf32>
    %33 = vector.shape_cast %32 : vector<128xf32> to vector<128x1xf32>
    %34 = arith.addf %28, %33 : vector<128x1xf32>
    %c0_16 = arith.constant 0 : index
    %c0_17 = arith.constant 0 : index
    %35 = vector.load %arg14[%c0_16, %c0_17] : memref<128x1xf32, #tpu.memory_space<vmem>>, vector<128x1xf32>
    tpu.vector_store %arg14[%c0_16, %c0_17], %34 {strides = array<i32>} : memref<128x1xf32, #tpu.memory_space<vmem>>, vector<128x1xf32>,
    %c0_18 = arith.constant 0 : index
    %c0_19 = arith.constant 0 : index
    %36 = vector.load %arg13[%c0_18, %c0_19] : memref<128x1xf32, #tpu.memory_space<vmem>>, vector<128x1xf32>
    tpu.vector_store %arg13[%c0_18, %c0_19], %23 {strides = array<i32>} : memref<128x1xf32, #tpu.memory_space<vmem>>, vector<128x1xf32>,
    %c0_20 = arith.constant 0 : index
    %c0_21 = arith.constant 0 : index
    %37 = vector.load %arg15[%c0_20, %c0_21] : memref<128x1xf32, #tpu.memory_space<vmem>>, vector<128x1xf32>
    %38 = arith.cmpi eq, %10, %14 : vector<128x128xi32>
    %cst_22 = arith.constant 0.000000e+00 : f32
    %39 = vector.broadcast %cst_22 : f32 to vector<128x128xf32>
    %40 = arith.select %38, %19, %39 : vector<128x128xi1>, vector<128x128xf32>
    %cst_23 = arith.constant dense<0.000000e+00> : vector<128xf32>
    %41 = vector.multi_reduction <add>, %40, %cst_23 [1] : vector<128x128xf32> to vector<128xf32>
    %42 = vector.shape_cast %41 : vector<128xf32> to vector<128x1xf32>
    %43 = arith.addf %37, %42 : vector<128x1xf32>
    %c0_24 = arith.constant 0 : index
    %c0_25 = arith.constant 0 : index
    %44 = vector.load %arg15[%c0_24, %c0_25] : memref<128x1xf32, #tpu.memory_space<vmem>>, vector<128x1xf32>
    tpu.vector_store %arg15[%c0_24, %c0_25], %43 {strides = array<i32>} : memref<128x1xf32, #tpu.memory_space<vmem>>, vector<128x1xf32>,
    %c0_i32_26 = arith.constant 0 : i32
    %45 = arith.cmpi eq, %arg2, %c0_i32_26 : i32
    %46 = arith.extui %45 : i1 to i32
    %c0_i32_27 = arith.constant 0 : i32
    %47 = arith.cmpi ne, %46, %c0_i32_27 : i32
    scf.if %47 {
      %c0_28 = arith.constant 0 : index
      %c0_29 = arith.constant 0 : index
      %48 = vector.load %arg14[%c0_28, %c0_29] : memref<128x1xf32, #tpu.memory_space<vmem>>, vector<128x1xf32>
      %49 = math.log %48 : vector<128x1xf32>
      %c0_30 = arith.constant 0 : index
      %c0_31 = arith.constant 0 : index
      %50 = vector.load %arg13[%c0_30, %c0_31] : memref<128x1xf32, #tpu.memory_space<vmem>>, vector<128x1xf32>
      %51 = arith.addf %49, %50 : vector<128x1xf32>
      %c0_32 = arith.constant 0 : index
      %c0_33 = arith.constant 0 : index
      %52 = vector.load %arg15[%c0_32, %c0_33] : memref<128x1xf32, #tpu.memory_space<vmem>>, vector<128x1xf32>
      %53 = arith.subf %51, %52 : vector<128x1xf32>
      %c0_34 = arith.constant 0 : index
      %c0_35 = arith.constant 0 : index
      %c0_36 = arith.constant 0 : index
      %54 = vector.load %arg10[%c0_34, %c0_35, %c0_36] : memref<1x128x1xf32, #tpu.memory_space<vmem>>, vector<1x128x1xf32>
      %55 = vector.shape_cast %54 : vector<1x128x1xf32> to vector<128x1xf32>
      %56 = vector.shape_cast %53 : vector<128x1xf32> to vector<1x128x1xf32>
      tpu.vector_store %arg10[%c0_34, %c0_35, %c0_36], %56 {strides = array<i32>} : memref<1x128x1xf32, #tpu.memory_space<vmem>>, vector<1x128x1xf32>,
    } else {
    }
    return
  }
  func.func @transform_0(%arg0: i32, %arg1: i32, %arg2: i32, %arg3: memref<6xi32, #tpu.memory_space<smem>>, %arg4: memref<6xi32, #tpu.memory_space<smem>>) -> (i32, i32, i32) {
    %0 = arith.index_cast %arg0 : i32 to index
    %1 = memref.load %arg3[%0] : memref<6xi32, #tpu.memory_space<smem>>
    %c0_i32 = arith.constant 0 : i32
    %c0_i32_0 = arith.constant 0 : i32
    return %1, %arg1, %c0_i32 : i32, i32, i32
  }
  func.func @transform_1(%arg0: i32, %arg1: i32, %arg2: i32, %arg3: memref<6xi32, #tpu.memory_space<smem>>, %arg4: memref<6xi32, #tpu.memory_space<smem>>) -> (i32, i32, i32) {
    %c0_i32 = arith.constant 0 : i32
    %c0_i32_0 = arith.constant 0 : i32
    %c0_i32_1 = arith.constant 0 : i32
    return %arg0, %c0_i32, %c0_i32_0 : i32, i32, i32
  }
  func.func @transform_2(%arg0: i32, %arg1: i32, %arg2: i32, %arg3: memref<6xi32, #tpu.memory_space<smem>>, %arg4: memref<6xi32, #tpu.memory_space<smem>>) -> (i32, i32, i32) {
    %0 = arith.index_cast %arg0 : i32 to index
    %1 = memref.load %arg4[%0] : memref<6xi32, #tpu.memory_space<smem>>
    %c0_i32 = arith.constant 0 : i32
    %c0_i32_0 = arith.constant 0 : i32
    return %1, %c0_i32, %arg2 : i32, i32, i32
  }
  func.func @transform_3(%arg0: i32, %arg1: i32, %arg2: i32, %arg3: memref<6xi32, #tpu.memory_space<smem>>, %arg4: memref<6xi32, #tpu.memory_space<smem>>) -> i32 {
    %c0_i32 = arith.constant 0 : i32
    %c0_i32_0 = arith.constant 0 : i32
    return %c0_i32 : i32
  }
  func.func @transform_4(%arg0: i32, %arg1: i32, %arg2: i32, %arg3: memref<6xi32, #tpu.memory_space<smem>>, %arg4: memref<6xi32, #tpu.memory_space<smem>>) -> i32 {
    %c0_i32 = arith.constant 0 : i32
    %c0_i32_0 = arith.constant 0 : i32
    return %c0_i32 : i32
  }
  func.func @transform_5(%arg0: i32, %arg1: i32, %arg2: i32, %arg3: memref<6xi32, #tpu.memory_space<smem>>, %arg4: memref<6xi32, #tpu.memory_space<smem>>) -> (i32, i32, i32) {
    %c0_i32 = arith.constant 0 : i32
    %c0_i32_0 = arith.constant 0 : i32
    return %arg0, %arg1, %c0_i32 : i32, i32, i32
  }
  func.func @transform_6(%arg0: i32, %arg1: i32, %arg2: i32, %arg3: memref<6xi32, #tpu.memory_space<smem>>, %arg4: memref<6xi32, #tpu.memory_space<smem>>) -> (i32, i32, i32) {
    %c0_i32 = arith.constant 0 : i32
    %c0_i32_0 = arith.constant 0 : i32
    return %arg0, %arg1, %c0_i32 : i32, i32, i32
  }
}

</mosaic_0001>

<llo_original>
// kernel: tpu_custom_call.1
$region0: #{tpu_custom_call.1}
  #allocation0 [shape = 'u32[]', space=smem, size = 0x4, offset = 0x4, fixed_abs, tag = 'smem constant byte address 0x4 - core index']
  #allocation1 [shape = 'u32[144,128]{1,0:T(1,128)}', space=vmem, size = 0x12000, scoped, tag = 'internal scratch']
  #allocation2 [shape = 'bf16[128,128]{1,0:T(16,128)(2,1)}', space=vmem, size = 0x8000, scoped, tag = 'scratch operand']
  #allocation3 [shape = 'f32[128,1]{1,0:T(8,128)}', space=vmem, size = 0x10000, scoped, tag = 'scratch operand']
  #allocation4 [shape = 'f32[128,1]{1,0:T(8,128)}', space=vmem, size = 0x10000, scoped, tag = 'scratch operand']
  #allocation5 [shape = 'f32[128,1]{1,0:T(8,128)}', space=vmem, size = 0x10000, scoped, tag = 'scratch operand']
  #allocation6 [shape = 's32[1]{0}', space=sflag, size = 0x4, scoped, tag = 'scoped memory for tpu_custom_call.1']
  #allocation7 [shape = 'u8[512]{0}', space=smem, size = 0x200, scoped, tag = 'prefetched SMEM operand 0']
  #allocation8 [shape = 'u8[512]{0}', space=smem, size = 0x200, scoped, tag = 'prefetched SMEM operand 1']
  #allocation9 [shape = 'f32[1]{0:T(128)S(6)}', space=smem, size = 0x200, scoped, tag = 'scoped memory for tpu_custom_call.1']
  #allocation10 [shape = 's32[1]{0:T(128)S(6)}', space=smem, size = 0x200, scoped, tag = 'scoped memory for tpu_custom_call.1']
  %s0 = inlined_call_operand.vmem [shape: s32[6], index: 0, kind: input, shape index: {}]
  %s1 = inlined_call_operand.vmem [shape: s32[6], index: 1, kind: input, shape index: {}]
  %s2 = inlined_call_operand.hbm [shape: bf16[3,128,128], index: 2, kind: input, shape index: {}]
  %s3 = inlined_call_operand.hbm [shape: bf16[6,128,128], index: 3, kind: input, shape index: {}]
  %s4 = inlined_call_operand.hbm [shape: bf16[3,128,128], index: 4, kind: input, shape index: {}]
  %s5 = inlined_call_operand.<no memory space> [shape: f32[1], index: 5, kind: input, shape index: {}]
  %s6 = inlined_call_operand.<no memory space> [shape: s32[1], index: 6, kind: input, shape index: {}]
  %s7 = inlined_call_operand.vmem [shape: f32[6,128,1], index: 7, kind: output, shape index: {0}]
  %s8 = inlined_call_operand.hbm [shape: bf16[6,128,128], index: 8, kind: output, shape index: {1}]
  %9 = xla_tuple %s7, %s8
  %s10 = sld [smem:[#allocation0]]
  $region81: #{tpu_custom_call.1} parent=0
    _
  %s12 = ssub.s32 1, %s10
  %s13 = scalar_select 0, %s12, %s10
  %s14 = sshll.u32 %s0, 4
  %s15 = int_to_ptr.vmem [resolvable:$true] %s14
  %17 = dma.vmem_to_smem %s15, 16, [#allocation7], [#allocation6]
  %s18 = sshll.u32 %s1, 4
  %s19 = int_to_ptr.vmem [resolvable:$true] %s18
  %21 = dma.vmem_to_smem %s19, 16, [#allocation8], [#allocation6]
  %22 = sst [smem:[#allocation9]] %s5
  %23 = sst [smem:[#allocation10]] %s6
  %24 = dma.done [#allocation6], 32
  %25 = sfence
  $region1: #{tpu_custom_call.1} parent=0
    #allocation11 [shape = 'u8[65536]{0}', space=vmem, size = 0x10000, scoped, tag = 'input window, operand 2']
    #allocation12 [shape = 's32[2]{0}', space=sflag, size = 0x8, scoped, tag = 'scoped memory for tpu_custom_call.1']
    #allocation13 [shape = 's32[2]{0}', space=sflag, size = 0x8, scoped, tag = 'scoped memory for tpu_custom_call.1']
    #allocation14 [shape = 'u8[65536]{0}', space=vmem, size = 0x10000, scoped, tag = 'input window, operand 3']
    #allocation15 [shape = 's32[2]{0}', space=sflag, size = 0x8, scoped, tag = 'scoped memory for tpu_custom_call.1']
    #allocation16 [shape = 'u8[65536]{0}', space=vmem, size = 0x10000, scoped, tag = 'input window, operand 4']
    #allocation17 [shape = 'u8[65536]{0}', space=vmem, size = 0x10000, scoped, tag = 'output window, operand 1']
    %26 = vsyncpa [#allocation12], 0
    %s27 = scalar_lea.sflag [#allocation12], 1
    %28 = vsyncpa %s27, 0
    %29 = vsyncpa [#allocation15], 0
    %s30 = scalar_lea.sflag [#allocation15], 1
    %31 = vsyncpa %s30, 0
    %32 = vsyncpa [#allocation13], 0
    %s33 = scalar_lea.sflag [#allocation13], 1
    %34 = vsyncpa %s33, 0
    loop: start=0, step=1, limit=8
    $region2: #{tpu_custom_call.1} parent=1 // loop_pre_header
      _
    $region3: #{tpu_custom_call.1} parent=1 // loop_header
      %s36 = sphi 0, %s40
      %p37 = scmp.ge.s32.totalorder %s36, 8
      %s43 = sphi 0, %s62
      %s44 = sphi 0, %s58
      %s45 = sphi 0, %s54
      %s46 = sphi 0, %s43
      %s47 = sphi 0, %s44
      %s48 = sphi 0, %s45
      %s49 = sphi 0, %s46
      %s50 = sphi 0, %s47
      %s51 = sphi 0, %s48
      %s69 = sphi 0, %s71
      %s72 = sphi 0, %s69
      %s73 = sphi 0, %s72
      %s89 = sphi 0, %s73
      %s95 = sphi 0, %s97
      %s98 = sphi 0, %s95
      %s99 = sphi 0, %s98
      %s115 = sphi 0, %s99
      %s125 = sphi 0, %s127
      %s128 = sphi 0, %s125
      %s129 = sphi 0, %s128
      %s145 = sphi 0, %s129
      %s149 = sphi 0, %s149
      %s151 = sphi 0, %s149
      %s152 = sphi 0, %s151
      %s166 = sphi 0, %s152
      %s170 = sphi 0, %s170
      %s172 = sphi 0, %s170
      %s173 = sphi 0, %s172
      %s187 = sphi 0, %s173
      %s195 = sphi 0, %s197
      %s198 = sphi 0, %s195
      %s199 = sphi 0, %s198
      %s215 = sphi 0, %s199
      %s223 = sphi 0, %s225
      %s226 = sphi 0, %s223
      %s227 = sphi 0, %s226
      %s243 = sphi 0, %s227
    $region4: #{tpu_custom_call.1} parent=1 // loop_header_branch
      %39 = sbr.rel (%p37) target = $region8
    $region5: #{tpu_custom_call.1} parent=1 // loop_body
      %s41 = ssub.s32 %s36, 1
      %s42 = ssub.s32 %s36, 2
      %s52 = sadd.s32 1, %s45
      %p53 = scmp.ge.s32.totalorder %s52, 1
      %s54 = scalar_select %p53, 0, %s52
      %s55 = sadd.s32 1, %s44
      %s56 = scalar_select %p53, %s55, %s44
      %p57 = scmp.ge.s32.totalorder %s56, 1
      %s58 = scalar_select %p57, 0, %s56
      %s59 = sadd.s32 1, %s43
      %s60 = scalar_select %p57, %s59, %s43
      %p61 = scmp.ge.s32.totalorder %s60, 6
      %s62 = scalar_select %p61, 0, %s60
      %s63 = sld [smem:[#allocation7 + %s43]]
      %s64 = sld [smem:[#allocation7 + %s62]]
      %s65 = ssub.s32 %s63, %s64
      %s66 = ssub.s32 %s44, %s58
      %s67 = sor.u32 %s65, %s66
      %p68 = scmp.eq.s32.totalorder %s67, 0
      %s70 = sadd.s32 %s69, 1
      %s71 = scalar_select %p68, %s69, %s70
      %p74 = pneg %p68
      %p75 = scmp.eq.s32.totalorder %s36, 5
      %p76 = por %p74, %p75
      %p77 = scmp.ne.s32.totalorder %s69, %s72
      %p78 = scmp.eq.s32.totalorder %s36, 0
      %p79 = por %p77, %p78
      %p80 = scmp.ne.s32.totalorder %s69, %s72
      %p81 = scmp.eq.s32.totalorder %s41, 5
      %p82 = por %p80, %p81
      %p83 = scmp.ne.s32.totalorder %s72, %s73
      %p84 = scmp.eq.s32.totalorder %s41, 0
      %p85 = por %p83, %p84
      %p86 = scmp.ne.s32.totalorder %s72, %s73
      %p87 = scmp.eq.s32.totalorder %s42, 5
      %p88 = por %p86, %p87
      %p90 = scmp.ne.s32.totalorder %s73, %s89
      %p91 = scmp.eq.s32.totalorder %s42, 0
      %p92 = por %p90, %p91
      %s93 = ssub.s32 %s43, %s62
      %p94 = scmp.eq.s32.totalorder %s93, 0
      %s96 = sadd.s32 %s95, 1
      %s97 = scalar_select %p94, %s95, %s96
      %p100 = pneg %p94
      %p101 = scmp.eq.s32.totalorder %s36, 5
      %p102 = por %p100, %p101
      %p103 = scmp.ne.s32.totalorder %s95, %s98
      %p104 = scmp.eq.s32.totalorder %s36, 0
      %p105 = por %p103, %p104
      %p106 = scmp.ne.s32.totalorder %s95, %s98
      %p107 = scmp.eq.s32.totalorder %s41, 5
      %p108 = por %p106, %p107
      %p109 = scmp.ne.s32.totalorder %s98, %s99
      %p110 = scmp.eq.s32.totalorder %s41, 0
      %p111 = por %p109, %p110
      %p112 = scmp.ne.s32.totalorder %s98, %s99
      %p113 = scmp.eq.s32.totalorder %s42, 5
      %p114 = por %p112, %p113
      %p116 = scmp.ne.s32.totalorder %s99, %s115
      %p117 = scmp.eq.s32.totalorder %s42, 0
      %p118 = por %p116, %p117
      %s119 = sld [smem:[#allocation8 + %s43]]
      %s120 = sld [smem:[#allocation8 + %s62]]
      %s121 = ssub.s32 %s119, %s120
      %s122 = ssub.s32 %s45, %s54
      %s123 = sor.u32 %s121, %s122
      %p124 = scmp.eq.s32.totalorder %s123, 0
      %s126 = sadd.s32 %s125, 1
      %s127 = scalar_select %p124, %s125, %s126
      %p130 = pneg %p124
      %p131 = scmp.eq.s32.totalorder %s36, 5
      %p132 = por %p130, %p131
      %p133 = scmp.ne.s32.totalorder %s125, %s128
      %p134 = scmp.eq.s32.totalorder %s36, 0
      %p135 = por %p133, %p134
      %p136 = scmp.ne.s32.totalorder %s125, %s128
      %p137 = scmp.eq.s32.totalorder %s41, 5
      %p138 = por %p136, %p137
      %p139 = scmp.ne.s32.totalorder %s128, %s129
      %p140 = scmp.eq.s32.totalorder %s41, 0
      %p141 = por %p139, %p140
      %p142 = scmp.ne.s32.totalorder %s128, %s129
      %p143 = scmp.eq.s32.totalorder %s42, 5
      %p144 = por %p142, %p143
      %p146 = scmp.ne.s32.totalorder %s129, %s145
      %p147 = scmp.eq.s32.totalorder %s42, 0
      %p148 = por %p146, %p147
      %s150 = sadd.s32 %s149, 1
      %p153 = scmp.eq.s32.totalorder %s36, 5
      %p154 = scmp.ne.s32.totalorder %s149, %s151
      %p155 = scmp.eq.s32.totalorder %s36, 0
      %p156 = por %p154, %p155
      %p157 = scmp.ne.s32.totalorder %s149, %s151
      %p158 = scmp.eq.s32.totalorder %s41, 5
      %p159 = por %p157, %p158
      %p160 = scmp.ne.s32.totalorder %s151, %s152
      %p161 = scmp.eq.s32.totalorder %s41, 0
      %p162 = por %p160, %p161
      %p163 = scmp.ne.s32.totalorder %s151, %s152
      %p164 = scmp.eq.s32.totalorder %s42, 5
      %p165 = por %p163, %p164
      %p167 = scmp.ne.s32.totalorder %s152, %s166
      %p168 = scmp.eq.s32.totalorder %s42, 0
      %p169 = por %p167, %p168
      %s171 = sadd.s32 %s170, 1
      %p174 = scmp.eq.s32.totalorder %s36, 5
      %p175 = scmp.ne.s32.totalorder %s170, %s172
      %p176 = scmp.eq.s32.totalorder %s36, 0
      %p177 = por %p175, %p176
      %p178 = scmp.ne.s32.totalorder %s170, %s172
      %p179 = scmp.eq.s32.totalorder %s41, 5
      %p180 = por %p178, %p179
      %p181 = scmp.ne.s32.totalorder %s172, %s173
      %p182 = scmp.eq.s32.totalorder %s41, 0
      %p183 = por %p181, %p182
      %p184 = scmp.ne.s32.totalorder %s172, %s173
      %p185 = scmp.eq.s32.totalorder %s42, 5
      %p186 = por %p184, %p185
      %p188 = scmp.ne.s32.totalorder %s173, %s187
      %p189 = scmp.eq.s32.totalorder %s42, 0
      %p190 = por %p188, %p189
      %s191 = ssub.s32 %s43, %s62
      %s192 = ssub.s32 %s44, %s58
      %s193 = sor.u32 %s191, %s192
      %p194 = scmp.eq.s32.totalorder %s193, 0
      %s196 = sadd.s32 %s195, 1
      %s197 = scalar_select %p194, %s195, %s196
      %p200 = pneg %p194
      %p201 = scmp.eq.s32.totalorder %s36, 5
      %p202 = por %p200, %p201
      %p203 = scmp.ne.s32.totalorder %s195, %s198
      %p204 = scmp.eq.s32.totalorder %s36, 0
      %p205 = por %p203, %p204
      %p206 = scmp.ne.s32.totalorder %s195, %s198
      %p207 = scmp.eq.s32.totalorder %s41, 5
      %p208 = por %p206, %p207
      %p209 = scmp.ne.s32.totalorder %s198, %s199
      %p210 = scmp.eq.s32.totalorder %s41, 0
      %p211 = por %p209, %p210
      %p212 = scmp.ne.s32.totalorder %s198, %s199
      %p213 = scmp.eq.s32.totalorder %s42, 5
      %p214 = por %p212, %p213
      %p216 = scmp.ne.s32.totalorder %s199, %s215
      %p217 = scmp.eq.s32.totalorder %s42, 0
      %p218 = por %p216, %p217
      %s219 = ssub.s32 %s43, %s62
      %s220 = ssub.s32 %s44, %s58
      %s221 = sor.u32 %s219, %s220
      %p222 = scmp.eq.s32.totalorder %s221, 0
      %s224 = sadd.s32 %s223, 1
      %s225 = scalar_select %p222, %s223, %s224
      %p228 = pneg %p222
      %p229 = scmp.eq.s32.totalorder %s36, 5
      %p230 = por %p228, %p229
      %p231 = scmp.ne.s32.totalorder %s223, %s226
      %p232 = scmp.eq.s32.totalorder %s36, 0
      %p233 = por %p231, %p232
      %p234 = scmp.ne.s32.totalorder %s223, %s226
      %p235 = scmp.eq.s32.totalorder %s41, 5
      %p236 = por %p234, %p235
      %p237 = scmp.ne.s32.totalorder %s226, %s227
      %p238 = scmp.eq.s32.totalorder %s41, 0
      %p239 = por %p237, %p238
      %p240 = scmp.ne.s32.totalorder %s226, %s227
      %p241 = scmp.eq.s32.totalorder %s42, 5
      %p242 = por %p240, %p241
      %p244 = scmp.ne.s32.totalorder %s227, %s243
      %p245 = scmp.eq.s32.totalorder %s42, 0
      %p246 = por %p244, %p245
      %p247 = scmp.le.s32.totalorder 1, %s36
      %p248 = scmp.lt.s32.totalorder %s36, 7
      %p249 = pnand %p247, %p248
      %p250 = pneg %p249
      // Predicated region
      $region9: #{tpu_custom_call.1} parent=5 // pred_check
        _
      $region10: #{tpu_custom_call.1} parent=5 // pred_check_branch
        %252 = sbr.rel (%p249) target = $region12
      $region11: #{tpu_custom_call.1} parent=5 // pred_region
        %s253 = ssub.s32 %s36, 1
        // Predicated region
        $region13: #{tpu_custom_call.1} parent=11 // pred_check
          %p254 = pneg %p162
        $region14: #{tpu_custom_call.1} parent=11 // pred_check_branch
          %256 = sbr.rel (%p254) target = $region16
        $region15: #{tpu_custom_call.1} parent=11 // pred_region
          _
        $region16: #{tpu_custom_call.1} parent=11 // pred_fallthru
          _
        // Predicated region
        $region17: #{tpu_custom_call.1} parent=11 // pred_check
          %p257 = pneg %p183
        $region18: #{tpu_custom_call.1} parent=11 // pred_check_branch
          %259 = sbr.rel (%p257) target = $region20
        $region19: #{tpu_custom_call.1} parent=11 // pred_region
          _
        $region20: #{tpu_custom_call.1} parent=11 // pred_fallthru
          _
      $region12: #{tpu_custom_call.1} parent=5 // pred_fallthru
        _
      %p260 = scmp.lt.s32.totalorder %s36, 6
      // Predicated region
      $region21: #{tpu_custom_call.1} parent=5 // pred_check
        %p261 = pneg %p260
      $region22: #{tpu_custom_call.1} parent=5 // pred_check_branch
        %263 = sbr.rel (%p261) target = $region24
      $region23: #{tpu_custom_call.1} parent=5 // pred_region
        // Predicated region
        $region25: #{tpu_custom_call.1} parent=23 // pred_check
          %p264 = pneg %p79
        $region26: #{tpu_custom_call.1} parent=23 // pred_check_branch
          %266 = sbr.rel (%p264) target = $region28
        $region27: #{tpu_custom_call.1} parent=23 // pred_region
          %s267 = sand.u32 %s69, 1
          %s268 = scalar_lea.sflag [#allocation12], %s267
          %s269 = sand.u32 %s69, 1
          %s270 = smul.addr %s269, 64
          %s271 = scalar_lea.vmem [#allocation11], %s270
          %s272 = sld [smem:[#allocation7 + %s43]]
          %s273 = smul.u32 16, %s44
          %s275 = ssub.s32 1024, 1024
          %276 = vsyncadd %s268, %s275
          %s277 = smul.addr %s272, 16
          %s278 = sadd.s32 %s273, %s277
          %s279 = smul.addr %s278, 64
          %s280 = scalar_lea.hbm %s2, %s279
          %s281 = sshll.u32 %s271, 4
          %s282 = int_to_ptr.vmem [resolvable:$true] %s281
          %287 = dma.hbm_to_vmem [thread:$0]  %s280, 1024, %s282, %s268, 64, 64, 4
        $region28: #{tpu_custom_call.1} parent=23 // pred_fallthru
          _
        // Predicated region
        $region29: #{tpu_custom_call.1} parent=23 // pred_check
          %p288 = pneg %p105
        $region30: #{tpu_custom_call.1} parent=23 // pred_check_branch
          %290 = sbr.rel (%p288) target = $region32
        $region31: #{tpu_custom_call.1} parent=23 // pred_region
          %s291 = sand.u32 %s36, 1
          %s292 = scalar_lea.sflag [#allocation15], %s291
          %s293 = sand.u32 %s95, 1
          %s294 = smul.addr %s293, 64
          %s295 = scalar_lea.vmem [#allocation14], %s294
          %s297 = ssub.s32 1024, 1024
          %298 = vsyncadd %s292, %s297
          %s299 = smul.addr %s43, 16
          %s300 = smul.addr %s299, 64
          %s301 = scalar_lea.hbm %s3, %s300
          %s302 = sshll.u32 %s295, 4
          %s303 = int_to_ptr.vmem [resolvable:$true] %s302
          %308 = dma.hbm_to_vmem [thread:$0]  %s301, 1024, %s303, %s292, 64, 64, 4
        $region32: #{tpu_custom_call.1} parent=23 // pred_fallthru
          _
        // Predicated region
        $region33: #{tpu_custom_call.1} parent=23 // pred_check
          %p309 = pneg %p135
        $region34: #{tpu_custom_call.1} parent=23 // pred_check_branch
          %311 = sbr.rel (%p309) target = $region36
        $region35: #{tpu_custom_call.1} parent=23 // pred_region
          %s312 = sand.u32 %s36, 1
          %s313 = scalar_lea.sflag [#allocation15], %s312
          %s314 = sand.u32 %s125, 1
          %s315 = smul.addr %s314, 64
          %s316 = scalar_lea.vmem [#allocation16], %s315
          %s317 = sld [smem:[#allocation8 + %s43]]
          %s319 = ssub.s32 1024, 1024
          %320 = vsyncadd %s313, %s319
          %s321 = smul.addr %s317, 16
          %s322 = sadd.s32 %s45, %s321
          %s323 = smul.addr %s322, 64
          %s324 = scalar_lea.hbm %s4, %s323
          %s325 = sshll.u32 %s316, 4
          %s326 = int_to_ptr.vmem [resolvable:$true] %s325
          %331 = dma.hbm_to_vmem [thread:$0]  %s324, 1024, %s326, %s313, 64, 64, 4
        $region36: #{tpu_custom_call.1} parent=23 // pred_fallthru
          _
      $region24: #{tpu_custom_call.1} parent=5 // pred_fallthru
        _
      %p332 = scmp.le.s32.totalorder 1, %s36
      %p333 = scmp.lt.s32.totalorder %s36, 7
      %p334 = pnand %p332, %p333
      %p335 = pneg %p334
      // Predicated region
      $region37: #{tpu_custom_call.1} parent=5 // pred_check
        _
      $region38: #{tpu_custom_call.1} parent=5 // pred_check_branch
        %337 = sbr.rel (%p334) target = $region40
      $region39: #{tpu_custom_call.1} parent=5 // pred_region
        %s338 = ssub.s32 %s36, 1
        %s339 = sand.u32 %s72, 1
        %s340 = scalar_lea.sflag [#allocation12], %s339
        %s341 = sand.u32 %s72, 1
        %s342 = smul.addr %s341, 64
        %s343 = scalar_lea.vmem [#allocation11], %s342
        // Predicated region
        $region41: #{tpu_custom_call.1} parent=39 // pred_check
          %p344 = pneg %p85
        $region42: #{tpu_custom_call.1} parent=39 // pred_check_branch
          %346 = sbr.rel (%p344) target = $region44
        $region43: #{tpu_custom_call.1} parent=39 // pred_region
          %347 = dma.done %s340, 1024
        $region44: #{tpu_custom_call.1} parent=39 // pred_fallthru
          _
        %s348 = sand.u32 %s41, 1
        %s349 = scalar_lea.sflag [#allocation15], %s348
        %s350 = sand.u32 %s98, 1
        %s351 = smul.addr %s350, 64
        %s352 = scalar_lea.vmem [#allocation14], %s351
        // Predicated region
        $region45: #{tpu_custom_call.1} parent=39 // pred_check
          %p353 = pneg %p111
        $region46: #{tpu_custom_call.1} parent=39 // pred_check_branch
          %355 = sbr.rel (%p353) target = $region48
        $region47: #{tpu_custom_call.1} parent=39 // pred_region
          %356 = dma.done %s349, 1024
        $region48: #{tpu_custom_call.1} parent=39 // pred_fallthru
          _
        %s357 = sand.u32 %s41, 1
        %s358 = scalar_lea.sflag [#allocation15], %s357
        %s359 = sand.u32 %s128, 1
        %s360 = smul.addr %s359, 64
        %s361 = scalar_lea.vmem [#allocation16], %s360
        // Predicated region
        $region49: #{tpu_custom_call.1} parent=39 // pred_check
          %p362 = pneg %p141
        $region50: #{tpu_custom_call.1} parent=39 // pred_check_branch
          %364 = sbr.rel (%p362) target = $region52
        $region51: #{tpu_custom_call.1} parent=39 // pred_region
          %365 = dma.done %s358, 1024
        $region52: #{tpu_custom_call.1} parent=39 // pred_fallthru
          _
        %s366 = sand.u32 %s72, 1
        %s367 = scalar_lea.sflag [#allocation12], %s366
        %s368 = sand.u32 %s72, 1
        %s369 = smul.addr %s368, 64
        %s370 = scalar_lea.vmem [#allocation11], %s369
        %p371 = pneg %p85
        %p372 = pneg %p82
        %s373 = sand.u32 %s41, 1
        %s374 = scalar_lea.sflag [#allocation15], %s373
        %s375 = sand.u32 %s98, 1
        %s376 = smul.addr %s375, 64
        %s377 = scalar_lea.vmem [#allocation14], %s376
        %p378 = pneg %p111
        %p379 = pneg %p108
        %s380 = sand.u32 %s41, 1
        %s381 = scalar_lea.sflag [#allocation15], %s380
        %s382 = sand.u32 %s128, 1
        %s383 = smul.addr %s382, 64
        %s384 = scalar_lea.vmem [#allocation16], %s383
        %p385 = pneg %p141
        %p386 = pneg %p138
        %p387 = pneg %p162
        %p388 = pneg %p159
        %p389 = pneg %p183
        %p390 = pneg %p180
        %p391 = pneg %p211
        %p392 = pneg %p208
        %s393 = smul.u32 16, %s47
        %p394 = scmp.lt.s32.totalorder %s46, 5
        %s395 = scalar_select %p394, %s46, 5
        %p396 = scmp.lt.s32.totalorder %s393, 15
        %s397 = scalar_select %p396, %s393, 15
        %s398 = smul.addr %s395, 16
        %s399 = sadd.s32 %s397, %s398
        %s400 = smul.addr %s399, 8
        %s401 = scalar_lea.vmem %s7, %s400
        %p402 = pneg %p239
        %p403 = pneg %p236
        %s404 = sand.u32 %s226, 1
        %s405 = scalar_lea.sflag [#allocation13], %s404
        %s406 = sand.u32 %s226, 1
        %s407 = smul.addr %s406, 64
        %s408 = scalar_lea.vmem [#allocation17], %s407
        %s409 = sld [smem:[#allocation7 + %s46]]
        %s410 = smul.u32 16, %s47
        %s411 = sld [smem:[#allocation8 + %s46]]
        %s412 = smul.u32 16, %s47
        %p413 = scmp.lt.s32.totalorder %s46, 5
        %s414 = scalar_select %p413, %s46, 5
        %p415 = scmp.lt.s32.totalorder %s412, 15
        %s416 = scalar_select %p415, %s412, 15
        %s417 = smul.addr %s414, 16
        %s418 = sadd.s32 %s416, %s417
        %s419 = smul.addr %s418, 8
        %s420 = scalar_lea.vmem %s7, %s419
        %s421 = smul.u32 16, %s47
        %s422 = smul.u32 16, %s47
        %p424 = scmp.eq.s32.totalorder %s48, 0
        // Predicated region
        $region53: #{tpu_custom_call.1} parent=39 // pred_check
          %p425 = pneg %p424
        $region54: #{tpu_custom_call.1} parent=39 // pred_check_branch
          %427 = sbr.rel (%p425) target = $region56
        $region55: #{tpu_custom_call.1} parent=39 // pred_region
          %s428 = sld [smem:[#allocation9]]
          %v429 = vld [vmem:[%s343] sm:$0xf]
          %v430 = vld [vmem:[%s343 + $0x4] sm:$0xf]
          %v431 = vld [vmem:[%s343 + $0x8] sm:$0xf]
          %v432 = vld [vmem:[%s343 + $0xc] sm:$0xf]
          %v433 = vld [vmem:[%s343 + $0x10] sm:$0xf]
          %v434 = vld [vmem:[%s343 + $0x14] sm:$0xf]
          %v435 = vld [vmem:[%s343 + $0x18] sm:$0xf]
          %v436 = vld [vmem:[%s343 + $0x1c] sm:$0xf]
          %v437 = vld [vmem:[%s343 + $0x20] sm:$0xf]
          %v438 = vld [vmem:[%s343 + $0x24] sm:$0xf]
          %v439 = vld [vmem:[%s343 + $0x28] sm:$0xf]
          %v440 = vld [vmem:[%s343 + $0x2c] sm:$0xf]
          %v441 = vld [vmem:[%s343 + $0x30] sm:$0xf]
          %v442 = vld [vmem:[%s343 + $0x34] sm:$0xf]
          %v443 = vld [vmem:[%s343 + $0x38] sm:$0xf]
          %v444 = vld [vmem:[%s343 + $0x3c] sm:$0xf]
          %v445 = vunpack.c.l.bf16 %v429
          %v446 = vunpack.c.l.bf16 %v430
          %v447 = vunpack.c.l.bf16 %v431
          %v448 = vunpack.c.l.bf16 %v432
          %v449 = vunpack.c.l.bf16 %v433
          %v450 = vunpack.c.l.bf16 %v434
          %v451 = vunpack.c.l.bf16 %v435
          %v452 = vunpack.c.l.bf16 %v436
          %v453 = vunpack.c.l.bf16 %v437
          %v454 = vunpack.c.l.bf16 %v438
          %v455 = vunpack.c.l.bf16 %v439
          %v456 = vunpack.c.l.bf16 %v440
          %v457 = vunpack.c.l.bf16 %v441
          %v458 = vunpack.c.l.bf16 %v442
          %v459 = vunpack.c.l.bf16 %v443
          %v460 = vunpack.c.l.bf16 %v444
          %v461 = vld [vmem:[%s352] sm:$0xf]
          %v462 = vld [vmem:[%s352 + $0x4] sm:$0xf]
          %v463 = vld [vmem:[%s352 + $0x8] sm:$0xf]
          %v464 = vld [vmem:[%s352 + $0xc] sm:$0xf]
          %v465 = vld [vmem:[%s352 + $0x10] sm:$0xf]
          %v466 = vld [vmem:[%s352 + $0x14] sm:$0xf]
          %v467 = vld [vmem:[%s352 + $0x18] sm:$0xf]
          %v468 = vld [vmem:[%s352 + $0x1c] sm:$0xf]
          %v469 = vld [vmem:[%s352 + $0x20] sm:$0xf]
          %v470 = vld [vmem:[%s352 + $0x24] sm:$0xf]
          %v471 = vld [vmem:[%s352 + $0x28] sm:$0xf]
          %v472 = vld [vmem:[%s352 + $0x2c] sm:$0xf]
          %v473 = vld [vmem:[%s352 + $0x30] sm:$0xf]
          %v474 = vld [vmem:[%s352 + $0x34] sm:$0xf]
          %v475 = vld [vmem:[%s352 + $0x38] sm:$0xf]
          %v476 = vld [vmem:[%s352 + $0x3c] sm:$0xf]
          %v493 = vunpack.c.l.b16 %v429
          %v494 = vunpack.c.l.b16 %v430
          %v495 = vunpack.c.l.b16 %v431
          %v496 = vunpack.c.l.b16 %v432
          %v497 = vunpack.c.l.b16 %v433
          %v498 = vunpack.c.l.b16 %v434
          %v499 = vunpack.c.l.b16 %v435
          %v500 = vunpack.c.l.b16 %v436
          %v501 = vunpack.c.l.b16 %v437
          %v502 = vunpack.c.l.b16 %v438
          %v503 = vunpack.c.l.b16 %v439
          %v504 = vunpack.c.l.b16 %v440
          %v505 = vunpack.c.l.b16 %v441
          %v506 = vunpack.c.l.b16 %v442
          %v507 = vunpack.c.l.b16 %v443
          %v508 = vunpack.c.l.b16 %v444
          %v509 = vpack.c.b16 %v494, %v493
          %v510 = vpack.c.b16 %v496, %v495
          %v511 = vpack.c.b16 %v498, %v497
          %v512 = vpack.c.b16 %v500, %v499
          %v513 = vpack.c.b16 %v502, %v501
          %v514 = vpack.c.b16 %v504, %v503
          %v515 = vpack.c.b16 %v506, %v505
          %v516 = vpack.c.b16 %v508, %v507
          %v541 = vunpack.c.l.b16 %v461
          %v542 = vunpack.c.l.b16 %v462
          %v543 = vunpack.c.l.b16 %v463
          %v544 = vunpack.c.l.b16 %v464
          %v545 = vunpack.c.l.b16 %v465
          %v546 = vunpack.c.l.b16 %v466
          %v547 = vunpack.c.l.b16 %v467
          %v548 = vunpack.c.l.b16 %v468
          %v549 = vunpack.c.l.b16 %v469
          %v550 = vunpack.c.l.b16 %v470
          %v551 = vunpack.c.l.b16 %v471
          %v552 = vunpack.c.l.b16 %v472
          %v553 = vunpack.c.l.b16 %v473
          %v554 = vunpack.c.l.b16 %v474
          %v555 = vunpack.c.l.b16 %v475
          %v556 = vunpack.c.l.b16 %v476
          %v557 = vpack.c.b16 %v542, %v541
          %v558 = vpack.c.b16 %v544, %v543
          %v559 = vpack.c.b16 %v546, %v545
          %v560 = vpack.c.b16 %v548, %v547
          %v561 = vpack.c.b16 %v550, %v549
          %v562 = vpack.c.b16 %v552, %v551
          %v563 = vpack.c.b16 %v554, %v553
          %v564 = vpack.c.b16 %v556, %v555
          %573 = vmatprep.subr.bf16.mxu0 0
          %574 = vmatpush1.bf16.msra.mxu0 %v557
          %575 = vmatprep.subr.bf16.mxu0 0
          %576 = vmatpush1.bf16.msra.mxu0 %v558
          %577 = vmatprep.subr.bf16.mxu0 0
          %578 = vmatpush1.bf16.msra.mxu0 %v559
          %579 = vmatprep.subr.bf16.mxu0 0
          %580 = vmatpush1.bf16.msra.mxu0 %v560
          %581 = vmatprep.subr.bf16.mxu0 0
          %582 = vmatpush1.bf16.msra.mxu0 %v561
          %583 = vmatprep.subr.bf16.mxu0 0
          %584 = vmatpush1.bf16.msra.mxu0 %v562
          %585 = vmatprep.subr.bf16.mxu0 0
          %586 = vmatpush1.bf16.msra.mxu0 %v563
          %587 = vmatprep.subr.bf16.mxu0 0
          %588 = vmatpush1.bf16.msra.mxu0 %v564
          %589 = vmatprep.subr.bf16.mxu0 0
          %590 = vmatpush1.bf16.msra.mxu0 0
          %591 = vmatprep.subr.bf16.mxu0 0
          %592 = vmatpush1.bf16.msra.mxu0 0
          %593 = vmatprep.subr.bf16.mxu0 0
          %594 = vmatpush1.bf16.msra.mxu0 0
          %595 = vmatprep.subr.bf16.mxu0 0
          %596 = vmatpush1.bf16.msra.mxu0 0
          %597 = vmatprep.subr.bf16.mxu0 0
          %598 = vmatpush1.bf16.msra.mxu0 0
          %599 = vmatprep.subr.bf16.mxu0 0
          %600 = vmatpush1.bf16.msra.mxu0 0
          %601 = vmatprep.subr.bf16.mxu0 0
          %602 = vmatpush1.bf16.msra.mxu0 0
          %603 = vmatprep.subr.bf16.mxu0 0
          %604 = vmatpush1.bf16.msra.mxu0 0
          %605 = vmatprep.mubr.bf16.mxu0 0
          %606 = vmatmul.mubr.bf16.gmra.mrb[0].mxu0 %v509
          %v607 = vpop.f32.mrb[0].mxu0
          %v608 = vadd.f32 %v445, %v607
          %v609 = vpop.f32.mrb[0].mxu0
          %v610 = vpop.f32.mrb[0].mxu0
          %v611 = vadd.f32 %v446, %v610
          %v612 = vpop.f32.mrb[0].mxu0
          %613 = vmatprep.mubr.bf16.mxu0 0
          %614 = vmatmul.mubr.bf16.gmra.mrb[0].mxu0 %v510
          %v615 = vpop.f32.mrb[0].mxu0
          %v616 = vadd.f32 %v447, %v615
          %v617 = vpop.f32.mrb[0].mxu0
          %v618 = vpop.f32.mrb[0].mxu0
          %v619 = vadd.f32 %v448, %v618
          %v620 = vpop.f32.mrb[0].mxu0
          %621 = vmatprep.mubr.bf16.mxu0 0
          %622 = vmatmul.mubr.bf16.gmra.mrb[0].mxu0 %v511
          %v623 = vpop.f32.mrb[0].mxu0
          %v624 = vadd.f32 %v449, %v623
          %v625 = vpop.f32.mrb[0].mxu0
          %v626 = vpop.f32.mrb[0].mxu0
          %v627 = vadd.f32 %v450, %v626
          %v628 = vpop.f32.mrb[0].mxu0
          %629 = vmatprep.mubr.bf16.mxu0 0
          %630 = vmatmul.mubr.bf16.gmra.mrb[0].mxu0 %v512
          %v631 = vpop.f32.mrb[0].mxu0
          %v632 = vadd.f32 %v451, %v631
          %v633 = vpop.f32.mrb[0].mxu0
          %v634 = vpop.f32.mrb[0].mxu0
          %v635 = vadd.f32 %v452, %v634
          %v636 = vpop.f32.mrb[0].mxu0
          %637 = vmatprep.mubr.bf16.mxu0 0
          %638 = vmatmul.mubr.bf16.gmra.mrb[0].mxu0 %v513
          %v639 = vpop.f32.mrb[0].mxu0
          %v640 = vadd.f32 %v453, %v639
          %v641 = vpop.f32.mrb[0].mxu0
          %v642 = vpop.f32.mrb[0].mxu0
          %v643 = vadd.f32 %v454, %v642
          %v644 = vpop.f32.mrb[0].mxu0
          %645 = vmatprep.mubr.bf16.mxu0 0
          %646 = vmatmul.mubr.bf16.gmra.mrb[0].mxu0 %v514
          %v647 = vpop.f32.mrb[0].mxu0
          %v648 = vadd.f32 %v455, %v647
          %v649 = vpop.f32.mrb[0].mxu0
          %v650 = vpop.f32.mrb[0].mxu0
          %v651 = vadd.f32 %v456, %v650
          %v652 = vpop.f32.mrb[0].mxu0
          %653 = vmatprep.mubr.bf16.mxu0 0
          %654 = vmatmul.mubr.bf16.gmra.mrb[0].mxu0 %v515
          %v655 = vpop.f32.mrb[0].mxu0
          %v656 = vadd.f32 %v457, %v655
          %v657 = vpop.f32.mrb[0].mxu0
          %v658 = vpop.f32.mrb[0].mxu0
          %v659 = vadd.f32 %v458, %v658
          %v660 = vpop.f32.mrb[0].mxu0
          %661 = vmatprep.mubr.bf16.mxu0 0
          %662 = vmatmul.mubr.bf16.gmra.mrb[0].mxu0 %v516
          %v663 = vpop.f32.mrb[0].mxu0
          %v664 = vadd.f32 %v459, %v663
          %v665 = vpop.f32.mrb[0].mxu0
          %v666 = vpop.f32.mrb[0].mxu0
          %v667 = vadd.f32 %v460, %v666
          %v668 = vpop.f32.mrb[0].mxu0
          %669 = vdwg.mxu0
          %v670 = vmul.f32 %v608, %v608
          %v671 = vmul.f32 %v611, %v611
          %v672 = vmul.f32 %v616, %v616
          %v673 = vmul.f32 %v619, %v619
          %v674 = vmul.f32 %v624, %v624
          %v675 = vmul.f32 %v627, %v627
          %v676 = vmul.f32 %v632, %v632
          %v677 = vmul.f32 %v635, %v635
          %v678 = vmul.f32 %v640, %v640
          %v679 = vmul.f32 %v643, %v643
          %v680 = vmul.f32 %v648, %v648
          %v681 = vmul.f32 %v651, %v651
          %v682 = vmul.f32 %v656, %v656
          %v683 = vmul.f32 %v659, %v659
          %v684 = vmul.f32 %v664, %v664
          %v685 = vmul.f32 %v667, %v667
          %686 = vadd.xlane.f32.xlu0 %v670
          %v687 = vpop.xlane.xlu0 %686
          %688 = vadd.xlane.f32.xlu0 %v671
          %v689 = vpop.xlane.xlu0 %688
          %690 = vadd.xlane.f32.xlu0 %v672
          %v691 = vpop.xlane.xlu0 %690
          %692 = vadd.xlane.f32.xlu0 %v673
          %v693 = vpop.xlane.xlu0 %692
          %694 = vadd.xlane.f32.xlu0 %v674
          %v695 = vpop.xlane.xlu0 %694
          %696 = vadd.xlane.f32.xlu0 %v675
          %v697 = vpop.xlane.xlu0 %696
          %698 = vadd.xlane.f32.xlu0 %v676
          %v699 = vpop.xlane.xlu0 %698
          %700 = vadd.xlane.f32.xlu0 %v677
          %v701 = vpop.xlane.xlu0 %700
          %702 = vadd.xlane.f32.xlu0 %v678
          %v703 = vpop.xlane.xlu0 %702
          %704 = vadd.xlane.f32.xlu0 %v679
          %v705 = vpop.xlane.xlu0 %704
          %706 = vadd.xlane.f32.xlu0 %v680
          %v707 = vpop.xlane.xlu0 %706
          %708 = vadd.xlane.f32.xlu0 %v681
          %v709 = vpop.xlane.xlu0 %708
          %710 = vadd.xlane.f32.xlu0 %v682
          %v711 = vpop.xlane.xlu0 %710
          %712 = vadd.xlane.f32.xlu0 %v683
          %v713 = vpop.xlane.xlu0 %712
          %714 = vadd.xlane.f32.xlu0 %v684
          %v715 = vpop.xlane.xlu0 %714
          %716 = vadd.xlane.f32.xlu0 %v685
          %v717 = vpop.xlane.xlu0 %716
          %v718 = vmax.f32 %v687, 1e-24
          %v719 = vmax.f32 %v689, 1e-24
          %v720 = vmax.f32 %v691, 1e-24
          %v721 = vmax.f32 %v693, 1e-24
          %v722 = vmax.f32 %v695, 1e-24
          %v723 = vmax.f32 %v697, 1e-24
          %v724 = vmax.f32 %v699, 1e-24
          %v725 = vmax.f32 %v701, 1e-24
          %v726 = vmax.f32 %v703, 1e-24
          %v727 = vmax.f32 %v705, 1e-24
          %v728 = vmax.f32 %v707, 1e-24
          %v729 = vmax.f32 %v709, 1e-24
          %v730 = vmax.f32 %v711, 1e-24
          %v731 = vmax.f32 %v713, 1e-24
          %v732 = vmax.f32 %v715, 1e-24
          %v733 = vmax.f32 %v717, 1e-24
          %v734 = vrsqrt.pop %v718
          %v735 = vrsqrt.pop %v719
          %v736 = vrsqrt.pop %v720
          %v737 = vrsqrt.pop %v721
          %v738 = vrsqrt.pop %v722
          %v739 = vrsqrt.pop %v723
          %v740 = vrsqrt.pop %v724
          %v741 = vrsqrt.pop %v725
          %v742 = vrsqrt.pop %v726
          %v743 = vrsqrt.pop %v727
          %v744 = vrsqrt.pop %v728
          %v745 = vrsqrt.pop %v729
          %v746 = vrsqrt.pop %v730
          %v747 = vrsqrt.pop %v731
          %v748 = vrsqrt.pop %v732
          %v749 = vrsqrt.pop %v733
          %v750 = vmul.f32 %v608, %v734
          %v751 = vmul.f32 %v611, %v735
          %v752 = vmul.f32 %v616, %v736
          %v753 = vmul.f32 %v619, %v737
          %v754 = vmul.f32 %v624, %v738
          %v755 = vmul.f32 %v627, %v739
          %v756 = vmul.f32 %v632, %v740
          %v757 = vmul.f32 %v635, %v741
          %v758 = vmul.f32 %v640, %v742
          %v759 = vmul.f32 %v643, %v743
          %v760 = vmul.f32 %v648, %v744
          %v761 = vmul.f32 %v651, %v745
          %v762 = vmul.f32 %v656, %v746
          %v763 = vmul.f32 %v659, %v747
          %v764 = vmul.f32 %v664, %v748
          %v765 = vmul.f32 %v667, %v749
          %v766 = vpack.c.bf16 %v751, %v750
          %v767 = vpack.c.bf16 %v753, %v752
          %v768 = vpack.c.bf16 %v755, %v754
          %v769 = vpack.c.bf16 %v757, %v756
          %v770 = vpack.c.bf16 %v759, %v758
          %v771 = vpack.c.bf16 %v761, %v760
          %v772 = vpack.c.bf16 %v763, %v762
          %v773 = vpack.c.bf16 %v765, %v764
          %v782 = vunpack.c.l.b16 %v766
          %v783 = vunpack.c.h.b16 %v766
          %v784 = vunpack.c.l.b16 %v767
          %v785 = vunpack.c.h.b16 %v767
          %v786 = vunpack.c.l.b16 %v768
          %v787 = vunpack.c.h.b16 %v768
          %v788 = vunpack.c.l.b16 %v769
          %v789 = vunpack.c.h.b16 %v769
          %v790 = vunpack.c.l.b16 %v770
          %v791 = vunpack.c.h.b16 %v770
          %v792 = vunpack.c.l.b16 %v771
          %v793 = vunpack.c.h.b16 %v771
          %v794 = vunpack.c.l.b16 %v772
          %v795 = vunpack.c.h.b16 %v772
          %v796 = vunpack.c.l.b16 %v773
          %v797 = vunpack.c.h.b16 %v773
          %v798 = vpack.c.b16 %v782, %v782
          %v799 = vpack.c.b16 %v783, %v783
          %v800 = vpack.c.b16 %v784, %v784
          %v801 = vpack.c.b16 %v785, %v785
          %v802 = vpack.c.b16 %v786, %v786
          %v803 = vpack.c.b16 %v787, %v787
          %v804 = vpack.c.b16 %v788, %v788
          %v805 = vpack.c.b16 %v789, %v789
          %v806 = vpack.c.b16 %v790, %v790
          %v807 = vpack.c.b16 %v791, %v791
          %v808 = vpack.c.b16 %v792, %v792
          %v809 = vpack.c.b16 %v793, %v793
          %v810 = vpack.c.b16 %v794, %v794
          %v811 = vpack.c.b16 %v795, %v795
          %v812 = vpack.c.b16 %v796, %v796
          %v813 = vpack.c.b16 %v797, %v797
          %830 = vst [vmem:[%s408] sm:$0xf] %v798
          %831 = vst [vmem:[%s408 + $0x4] sm:$0xf] %v799
          %832 = vst [vmem:[%s408 + $0x8] sm:$0xf] %v800
          %833 = vst [vmem:[%s408 + $0xc] sm:$0xf] %v801
          %834 = vst [vmem:[%s408 + $0x10] sm:$0xf] %v802
          %835 = vst [vmem:[%s408 + $0x14] sm:$0xf] %v803
          %836 = vst [vmem:[%s408 + $0x18] sm:$0xf] %v804
          %837 = vst [vmem:[%s408 + $0x1c] sm:$0xf] %v805
          %838 = vst [vmem:[%s408 + $0x20] sm:$0xf] %v806
          %839 = vst [vmem:[%s408 + $0x24] sm:$0xf] %v807
          %840 = vst [vmem:[%s408 + $0x28] sm:$0xf] %v808
          %841 = vst [vmem:[%s408 + $0x2c] sm:$0xf] %v809
          %842 = vst [vmem:[%s408 + $0x30] sm:$0xf] %v810
          %843 = vst [vmem:[%s408 + $0x34] sm:$0xf] %v811
          %844 = vst [vmem:[%s408 + $0x38] sm:$0xf] %v812
          %845 = vst [vmem:[%s408 + $0x3c] sm:$0xf] %v813
          %v846 = vstv %s428
          %v847 = vmul.f32 %v750, %v846
          %v848 = vmul.f32 %v751, %v846
          %v849 = vmul.f32 %v752, %v846
          %v850 = vmul.f32 %v753, %v846
          %v851 = vmul.f32 %v754, %v846
          %v852 = vmul.f32 %v755, %v846
          %v853 = vmul.f32 %v756, %v846
          %v854 = vmul.f32 %v757, %v846
          %v855 = vmul.f32 %v758, %v846
          %v856 = vmul.f32 %v759, %v846
          %v857 = vmul.f32 %v760, %v846
          %v858 = vmul.f32 %v761, %v846
          %v859 = vmul.f32 %v762, %v846
          %v860 = vmul.f32 %v763, %v846
          %v861 = vmul.f32 %v764, %v846
          %v862 = vmul.f32 %v765, %v846
          %v863 = vpack.c.bf16 %v848, %v847
          %v864 = vpack.c.bf16 %v850, %v849
          %v865 = vpack.c.bf16 %v852, %v851
          %v866 = vpack.c.bf16 %v854, %v853
          %v867 = vpack.c.bf16 %v856, %v855
          %v868 = vpack.c.bf16 %v858, %v857
          %v869 = vpack.c.bf16 %v860, %v859
          %v870 = vpack.c.bf16 %v862, %v861
          %871 = vst [vmem:[#allocation2] sm:$0xff] %v863
          %872 = vst [vmem:[#allocation2 + $0x8] sm:$0xff] %v864
          %873 = vst [vmem:[#allocation2 + $0x10] sm:$0xff] %v865
          %874 = vst [vmem:[#allocation2 + $0x18] sm:$0xff] %v866
          %875 = vst [vmem:[#allocation2 + $0x20] sm:$0xff] %v867
          %876 = vst [vmem:[#allocation2 + $0x28] sm:$0xff] %v868
          %877 = vst [vmem:[#allocation2 + $0x30] sm:$0xff] %v869
          %878 = vst [vmem:[#allocation2 + $0x38] sm:$0xff] %v870
          %vm879 = vcmask 7168
          %880 = vst.msk [vmem:[#allocation3] sm:$0xff] %vm879, -1e+30
          %881 = vst.msk [vmem:[#allocation3 + $0x8] sm:$0xff] %vm879, -1e+30
          %882 = vst.msk [vmem:[#allocation3 + $0x10] sm:$0xff] %vm879, -1e+30
          %883 = vst.msk [vmem:[#allocation3 + $0x18] sm:$0xff] %vm879, -1e+30
          %884 = vst.msk [vmem:[#allocation3 + $0x20] sm:$0xff] %vm879, -1e+30
          %885 = vst.msk [vmem:[#allocation3 + $0x28] sm:$0xff] %vm879, -1e+30
          %886 = vst.msk [vmem:[#allocation3 + $0x30] sm:$0xff] %vm879, -1e+30
          %887 = vst.msk [vmem:[#allocation3 + $0x38] sm:$0xff] %vm879, -1e+30
          %888 = vst.msk [vmem:[#allocation3 + $0x40] sm:$0xff] %vm879, -1e+30
          %889 = vst.msk [vmem:[#allocation3 + $0x48] sm:$0xff] %vm879, -1e+30
          %890 = vst.msk [vmem:[#allocation3 + $0x50] sm:$0xff] %vm879, -1e+30
          %891 = vst.msk [vmem:[#allocation3 + $0x58] sm:$0xff] %vm879, -1e+30
          %892 = vst.msk [vmem:[#allocation3 + $0x60] sm:$0xff] %vm879, -1e+30
          %893 = vst.msk [vmem:[#allocation3 + $0x68] sm:$0xff] %vm879, -1e+30
          %894 = vst.msk [vmem:[#allocation3 + $0x70] sm:$0xff] %vm879, -1e+30
          %895 = vst.msk [vmem:[#allocation3 + $0x78] sm:$0xff] %vm879, -1e+30
          %896 = vst.msk [vmem:[#allocation4] sm:$0xff] %vm879, 0.0
          %897 = vst.msk [vmem:[#allocation4 + $0x8] sm:$0xff] %vm879, 0.0
          %898 = vst.msk [vmem:[#allocation4 + $0x10] sm:$0xff] %vm879, 0.0
          %899 = vst.msk [vmem:[#allocation4 + $0x18] sm:$0xff] %vm879, 0.0
          %900 = vst.msk [vmem:[#allocation4 + $0x20] sm:$0xff] %vm879, 0.0
          %901 = vst.msk [vmem:[#allocation4 + $0x28] sm:$0xff] %vm879, 0.0
          %902 = vst.msk [vmem:[#allocation4 + $0x30] sm:$0xff] %vm879, 0.0
          %903 = vst.msk [vmem:[#allocation4 + $0x38] sm:$0xff] %vm879, 0.0
          %904 = vst.msk [vmem:[#allocation4 + $0x40] sm:$0xff] %vm879, 0.0
          %905 = vst.msk [vmem:[#allocation4 + $0x48] sm:$0xff] %vm879, 0.0
          %906 = vst.msk [vmem:[#allocation4 + $0x50] sm:$0xff] %vm879, 0.0
          %907 = vst.msk [vmem:[#allocation4 + $0x58] sm:$0xff] %vm879, 0.0
          %908 = vst.msk [vmem:[#allocation4 + $0x60] sm:$0xff] %vm879, 0.0
          %909 = vst.msk [vmem:[#allocation4 + $0x68] sm:$0xff] %vm879, 0.0
          %910 = vst.msk [vmem:[#allocation4 + $0x70] sm:$0xff] %vm879, 0.0
          %911 = vst.msk [vmem:[#allocation4 + $0x78] sm:$0xff] %vm879, 0.0
          %912 = vst.msk [vmem:[#allocation5] sm:$0xff] %vm879, 0.0
          %913 = vst.msk [vmem:[#allocation5 + $0x8] sm:$0xff] %vm879, 0.0
          %914 = vst.msk [vmem:[#allocation5 + $0x10] sm:$0xff] %vm879, 0.0
          %915 = vst.msk [vmem:[#allocation5 + $0x18] sm:$0xff] %vm879, 0.0
          %916 = vst.msk [vmem:[#allocation5 + $0x20] sm:$0xff] %vm879, 0.0
          %917 = vst.msk [vmem:[#allocation5 + $0x28] sm:$0xff] %vm879, 0.0
          %918 = vst.msk [vmem:[#allocation5 + $0x30] sm:$0xff] %vm879, 0.0
          %919 = vst.msk [vmem:[#allocation5 + $0x38] sm:$0xff] %vm879, 0.0
          %920 = vst.msk [vmem:[#allocation5 + $0x40] sm:$0xff] %vm879, 0.0
          %921 = vst.msk [vmem:[#allocation5 + $0x48] sm:$0xff] %vm879, 0.0
          %922 = vst.msk [vmem:[#allocation5 + $0x50] sm:$0xff] %vm879, 0.0
          %923 = vst.msk [vmem:[#allocation5 + $0x58] sm:$0xff] %vm879, 0.0
          %924 = vst.msk [vmem:[#allocation5 + $0x60] sm:$0xff] %vm879, 0.0
          %925 = vst.msk [vmem:[#allocation5 + $0x68] sm:$0xff] %vm879, 0.0
          %926 = vst.msk [vmem:[#allocation5 + $0x70] sm:$0xff] %vm879, 0.0
          %927 = vst.msk [vmem:[#allocation5 + $0x78] sm:$0xff] %vm879, 0.0
        $region56: #{tpu_custom_call.1} parent=39 // pred_fallthru
          _
        %v928 = vld [vmem:[#allocation2] sm:$0xff]
        %v929 = vld [vmem:[#allocation2 + $0x8] sm:$0xff]
        %v930 = vld [vmem:[#allocation2 + $0x10] sm:$0xff]
        %v931 = vld [vmem:[#allocation2 + $0x18] sm:$0xff]
        %v932 = vld [vmem:[#allocation2 + $0x20] sm:$0xff]
        %v933 = vld [vmem:[#allocation2 + $0x28] sm:$0xff]
        %v934 = vld [vmem:[#allocation2 + $0x30] sm:$0xff]
        %v935 = vld [vmem:[#allocation2 + $0x38] sm:$0xff]
        %v936 = vld [vmem:[%s361] sm:$0xf]
        %v937 = vld [vmem:[%s361 + $0x4] sm:$0xf]
        %v938 = vld [vmem:[%s361 + $0x8] sm:$0xf]
        %v939 = vld [vmem:[%s361 + $0xc] sm:$0xf]
        %v940 = vld [vmem:[%s361 + $0x10] sm:$0xf]
        %v941 = vld [vmem:[%s361 + $0x14] sm:$0xf]
        %v942 = vld [vmem:[%s361 + $0x18] sm:$0xf]
        %v943 = vld [vmem:[%s361 + $0x1c] sm:$0xf]
        %v944 = vld [vmem:[%s361 + $0x20] sm:$0xf]
        %v945 = vld [vmem:[%s361 + $0x24] sm:$0xf]
        %v946 = vld [vmem:[%s361 + $0x28] sm:$0xf]
        %v947 = vld [vmem:[%s361 + $0x2c] sm:$0xf]
        %v948 = vld [vmem:[%s361 + $0x30] sm:$0xf]
        %v949 = vld [vmem:[%s361 + $0x34] sm:$0xf]
        %v950 = vld [vmem:[%s361 + $0x38] sm:$0xf]
        %v951 = vld [vmem:[%s361 + $0x3c] sm:$0xf]
        %v968 = vunpack.c.l.b16 %v936
        %v969 = vunpack.c.l.b16 %v937
        %v970 = vunpack.c.l.b16 %v938
        %v971 = vunpack.c.l.b16 %v939
        %v972 = vunpack.c.l.b16 %v940
        %v973 = vunpack.c.l.b16 %v941
        %v974 = vunpack.c.l.b16 %v942
        %v975 = vunpack.c.l.b16 %v943
        %v976 = vunpack.c.l.b16 %v944
        %v977 = vunpack.c.l.b16 %v945
        %v978 = vunpack.c.l.b16 %v946
        %v979 = vunpack.c.l.b16 %v947
        %v980 = vunpack.c.l.b16 %v948
        %v981 = vunpack.c.l.b16 %v949
        %v982 = vunpack.c.l.b16 %v950
        %v983 = vunpack.c.l.b16 %v951
        %v984 = vpack.c.b16 %v969, %v968
        %v985 = vpack.c.b16 %v971, %v970
        %v986 = vpack.c.b16 %v973, %v972
        %v987 = vpack.c.b16 %v975, %v974
        %v988 = vpack.c.b16 %v977, %v976
        %v989 = vpack.c.b16 %v979, %v978
        %v990 = vpack.c.b16 %v981, %v980
        %v991 = vpack.c.b16 %v983, %v982
        %1000 = vmatprep.subr.bf16.mxu0 0
        %1001 = vmatpush1.bf16.msra.mxu0 %v984
        %1002 = vmatprep.subr.bf16.mxu0 0
        %1003 = vmatpush1.bf16.msra.mxu0 %v985
        %1004 = vmatprep.subr.bf16.mxu0 0
        %1005 = vmatpush1.bf16.msra.mxu0 %v986
        %1006 = vmatprep.subr.bf16.mxu0 0
        %1007 = vmatpush1.bf16.msra.mxu0 %v987
        %1008 = vmatprep.subr.bf16.mxu0 0
        %1009 = vmatpush1.bf16.msra.mxu0 %v988
        %1010 = vmatprep.subr.bf16.mxu0 0
        %1011 = vmatpush1.bf16.msra.mxu0 %v989
        %1012 = vmatprep.subr.bf16.mxu0 0
        %1013 = vmatpush1.bf16.msra.mxu0 %v990
        %1014 = vmatprep.subr.bf16.mxu0 0
        %1015 = vmatpush1.bf16.msra.mxu0 %v991
        %1016 = vmatprep.subr.bf16.mxu0 0
        %1017 = vmatpush1.bf16.msra.mxu0 0
        %1018 = vmatprep.subr.bf16.mxu0 0
        %1019 = vmatpush1.bf16.msra.mxu0 0
        %1020 = vmatprep.subr.bf16.mxu0 0
        %1021 = vmatpush1.bf16.msra.mxu0 0
        %1022 = vmatprep.subr.bf16.mxu0 0
        %1023 = vmatpush1.bf16.msra.mxu0 0
        %1024 = vmatprep.subr.bf16.mxu0 0
        %1025 = vmatpush1.bf16.msra.mxu0 0
        %1026 = vmatprep.subr.bf16.mxu0 0
        %1027 = vmatpush1.bf16.msra.mxu0 0
        %1028 = vmatprep.subr.bf16.mxu0 0
        %1029 = vmatpush1.bf16.msra.mxu0 0
        %1030 = vmatprep.subr.bf16.mxu0 0
        %1031 = vmatpush1.bf16.msra.mxu0 0
        %1032 = vmatprep.mubr.bf16.mxu0 0
        %1033 = vmatmul.mubr.bf16.gmra.mrb[0].mxu0 %v928
        %v1034 = vpop.f32.mrb[0].mxu0
        %v1035 = vadd.f32 0.0, %v1034
        %v1036 = vpop.f32.mrb[0].mxu0
        %v1037 = vpop.f32.mrb[0].mxu0
        %v1038 = vadd.f32 0.0, %v1037
        %v1039 = vpop.f32.mrb[0].mxu0
        %1040 = vmatprep.mubr.bf16.mxu0 0
        %1041 = vmatmul.mubr.bf16.gmra.mrb[0].mxu0 %v929
        %v1042 = vpop.f32.mrb[0].mxu0
        %v1043 = vadd.f32 0.0, %v1042
        %v1044 = vpop.f32.mrb[0].mxu0
        %v1045 = vpop.f32.mrb[0].mxu0
        %v1046 = vadd.f32 0.0, %v1045
        %v1047 = vpop.f32.mrb[0].mxu0
        %1048 = vmatprep.mubr.bf16.mxu0 0
        %1049 = vmatmul.mubr.bf16.gmra.mrb[0].mxu0 %v930
        %v1050 = vpop.f32.mrb[0].mxu0
        %v1051 = vadd.f32 0.0, %v1050
        %v1052 = vpop.f32.mrb[0].mxu0
        %v1053 = vpop.f32.mrb[0].mxu0
        %v1054 = vadd.f32 0.0, %v1053
        %v1055 = vpop.f32.mrb[0].mxu0
        %1056 = vmatprep.mubr.bf16.mxu0 0
        %1057 = vmatmul.mubr.bf16.gmra.mrb[0].mxu0 %v931
        %v1058 = vpop.f32.mrb[0].mxu0
        %v1059 = vadd.f32 0.0, %v1058
        %v1060 = vpop.f32.mrb[0].mxu0
        %v1061 = vpop.f32.mrb[0].mxu0
        %v1062 = vadd.f32 0.0, %v1061
        %v1063 = vpop.f32.mrb[0].mxu0
        %1064 = vmatprep.mubr.bf16.mxu0 0
        %1065 = vmatmul.mubr.bf16.gmra.mrb[0].mxu0 %v932
        %v1066 = vpop.f32.mrb[0].mxu0
        %v1067 = vadd.f32 0.0, %v1066
        %v1068 = vpop.f32.mrb[0].mxu0
        %v1069 = vpop.f32.mrb[0].mxu0
        %v1070 = vadd.f32 0.0, %v1069
        %v1071 = vpop.f32.mrb[0].mxu0
        %1072 = vmatprep.mubr.bf16.mxu0 0
        %1073 = vmatmul.mubr.bf16.gmra.mrb[0].mxu0 %v933
        %v1074 = vpop.f32.mrb[0].mxu0
        %v1075 = vadd.f32 0.0, %v1074
        %v1076 = vpop.f32.mrb[0].mxu0
        %v1077 = vpop.f32.mrb[0].mxu0
        %v1078 = vadd.f32 0.0, %v1077
        %v1079 = vpop.f32.mrb[0].mxu0
        %1080 = vmatprep.mubr.bf16.mxu0 0
        %1081 = vmatmul.mubr.bf16.gmra.mrb[0].mxu0 %v934
        %v1082 = vpop.f32.mrb[0].mxu0
        %v1083 = vadd.f32 0.0, %v1082
        %v1084 = vpop.f32.mrb[0].mxu0
        %v1085 = vpop.f32.mrb[0].mxu0
        %v1086 = vadd.f32 0.0, %v1085
        %v1087 = vpop.f32.mrb[0].mxu0
        %1088 = vmatprep.mubr.bf16.mxu0 0
        %1089 = vmatmul.mubr.bf16.gmra.mrb[0].mxu0 %v935
        %v1090 = vpop.f32.mrb[0].mxu0
        %v1091 = vadd.f32 0.0, %v1090
        %v1092 = vpop.f32.mrb[0].mxu0
        %v1093 = vpop.f32.mrb[0].mxu0
        %v1094 = vadd.f32 0.0, %v1093
        %v1095 = vpop.f32.mrb[0].mxu0
        %1096 = vdwg.mxu0
        %s1097 = smul.u32 %s48, 128
        %v1098 = vlaneseq
        %v1099 = vand.u32 %v1098, 127
        %v1100 = vstv %s1097
        %v1101 = vadd.s32 %v1100, %v1099
        %s1102 = smul.u32 %s47, 128
        %v1103 = vlaneseq
        %v1104 = vshrl.u32 %v1103, 7
        %v1105 = vadd.s32 %v1104, 8
        %v1106 = vadd.s32 %v1104, 16
        %v1107 = vadd.s32 %v1104, 24
        %v1108 = vadd.s32 %v1104, 32
        %v1109 = vadd.s32 %v1104, 40
        %v1110 = vadd.s32 %v1104, 48
        %v1111 = vadd.s32 %v1104, 56
        %v1112 = vadd.s32 %v1104, 64
        %v1113 = vadd.s32 %v1104, 72
        %v1114 = vadd.s32 %v1104, 80
        %v1115 = vadd.s32 %v1104, 88
        %v1116 = vadd.s32 %v1104, 96
        %v1117 = vadd.s32 %v1104, 104
        %v1118 = vadd.s32 %v1104, 112
        %v1119 = vadd.s32 %v1104, 120
        %v1120 = vstv %s1102
        %v1121 = vadd.s32 %v1120, %v1104
        %v1122 = vadd.s32 %v1120, %v1105
        %v1123 = vadd.s32 %v1120, %v1106
        %v1124 = vadd.s32 %v1120, %v1107
        %v1125 = vadd.s32 %v1120, %v1108
        %v1126 = vadd.s32 %v1120, %v1109
        %v1127 = vadd.s32 %v1120, %v1110
        %v1128 = vadd.s32 %v1120, %v1111
        %v1129 = vadd.s32 %v1120, %v1112
        %v1130 = vadd.s32 %v1120, %v1113
        %v1131 = vadd.s32 %v1120, %v1114
        %v1132 = vadd.s32 %v1120, %v1115
        %v1133 = vadd.s32 %v1120, %v1116
        %v1134 = vadd.s32 %v1120, %v1117
        %v1135 = vadd.s32 %v1120, %v1118
        %v1136 = vadd.s32 %v1120, %v1119
        %s1137 = sld [smem:[#allocation10]]
        %v1138 = vstv %s1137
        %vm1139 = vcmp.lt.s32.totalorder %v1101, %v1138
        %v1140 = vsel %vm1139, %v1035, -1e+30
        %v1141 = vsel %vm1139, %v1038, -1e+30
        %v1142 = vsel %vm1139, %v1043, -1e+30
        %v1143 = vsel %vm1139, %v1046, -1e+30
        %v1144 = vsel %vm1139, %v1051, -1e+30
        %v1145 = vsel %vm1139, %v1054, -1e+30
        %v1146 = vsel %vm1139, %v1059, -1e+30
        %v1147 = vsel %vm1139, %v1062, -1e+30
        %v1148 = vsel %vm1139, %v1067, -1e+30
        %v1149 = vsel %vm1139, %v1070, -1e+30
        %v1150 = vsel %vm1139, %v1075, -1e+30
        %v1151 = vsel %vm1139, %v1078, -1e+30
        %v1152 = vsel %vm1139, %v1083, -1e+30
        %v1153 = vsel %vm1139, %v1086, -1e+30
        %v1154 = vsel %vm1139, %v1091, -1e+30
        %v1155 = vsel %vm1139, %v1094, -1e+30
        %1156 = vmax.xlane.f32.xlu0 %v1140
        %v1157 = vpop.xlane.xlu0 %1156
        %1158 = vmax.xlane.f32.xlu0 %v1141
        %v1159 = vpop.xlane.xlu0 %1158
        %1160 = vmax.xlane.f32.xlu0 %v1142
        %v1161 = vpop.xlane.xlu0 %1160
        %1162 = vmax.xlane.f32.xlu0 %v1143
        %v1163 = vpop.xlane.xlu0 %1162
        %1164 = vmax.xlane.f32.xlu0 %v1144
        %v1165 = vpop.xlane.xlu0 %1164
        %1166 = vmax.xlane.f32.xlu0 %v1145
        %v1167 = vpop.xlane.xlu0 %1166
        %1168 = vmax.xlane.f32.xlu0 %v1146
        %v1169 = vpop.xlane.xlu0 %1168
        %1170 = vmax.xlane.f32.xlu0 %v1147
        %v1171 = vpop.xlane.xlu0 %1170
        %1172 = vmax.xlane.f32.xlu0 %v1148
        %v1173 = vpop.xlane.xlu0 %1172
        %1174 = vmax.xlane.f32.xlu0 %v1149
        %v1175 = vpop.xlane.xlu0 %1174
        %1176 = vmax.xlane.f32.xlu0 %v1150
        %v1177 = vpop.xlane.xlu0 %1176
        %1178 = vmax.xlane.f32.xlu0 %v1151
        %v1179 = vpop.xlane.xlu0 %1178
        %1180 = vmax.xlane.f32.xlu0 %v1152
        %v1181 = vpop.xlane.xlu0 %1180
        %1182 = vmax.xlane.f32.xlu0 %v1153
        %v1183 = vpop.xlane.xlu0 %1182
        %1184 = vmax.xlane.f32.xlu0 %v1154
        %v1185 = vpop.xlane.xlu0 %1184
        %1186 = vmax.xlane.f32.xlu0 %v1155
        %v1187 = vpop.xlane.xlu0 %1186
        %v1188 = vld [vmem:[#allocation3] sm:$0xff]
        %v1189 = vld [vmem:[#allocation3 + $0x8] sm:$0xff]
        %v1190 = vld [vmem:[#allocation3 + $0x10] sm:$0xff]
        %v1191 = vld [vmem:[#allocation3 + $0x18] sm:$0xff]
        %v1192 = vld [vmem:[#allocation3 + $0x20] sm:$0xff]
        %v1193 = vld [vmem:[#allocation3 + $0x28] sm:$0xff]
        %v1194 = vld [vmem:[#allocation3 + $0x30] sm:$0xff]
        %v1195 = vld [vmem:[#allocation3 + $0x38] sm:$0xff]
        %v1196 = vld [vmem:[#allocation3 + $0x40] sm:$0xff]
        %v1197 = vld [vmem:[#allocation3 + $0x48] sm:$0xff]
        %v1198 = vld [vmem:[#allocation3 + $0x50] sm:$0xff]
        %v1199 = vld [vmem:[#allocation3 + $0x58] sm:$0xff]
        %v1200 = vld [vmem:[#allocation3 + $0x60] sm:$0xff]
        %v1201 = vld [vmem:[#allocation3 + $0x68] sm:$0xff]
        %v1202 = vld [vmem:[#allocation3 + $0x70] sm:$0xff]
        %v1203 = vld [vmem:[#allocation3 + $0x78] sm:$0xff]
        %v1204 = vmax.f32 %v1188, %v1157
        %v1205 = vmax.f32 %v1189, %v1159
        %v1206 = vmax.f32 %v1190, %v1161
        %v1207 = vmax.f32 %v1191, %v1163
        %v1208 = vmax.f32 %v1192, %v1165
        %v1209 = vmax.f32 %v1193, %v1167
        %v1210 = vmax.f32 %v1194, %v1169
        %v1211 = vmax.f32 %v1195, %v1171
        %v1212 = vmax.f32 %v1196, %v1173
        %v1213 = vmax.f32 %v1197, %v1175
        %v1214 = vmax.f32 %v1198, %v1177
        %v1215 = vmax.f32 %v1199, %v1179
        %v1216 = vmax.f32 %v1200, %v1181
        %v1217 = vmax.f32 %v1201, %v1183
        %v1218 = vmax.f32 %v1202, %v1185
        %v1219 = vmax.f32 %v1203, %v1187
        %v1220 = vsub.f32 %v1188, %v1204
        %v1221 = vsub.f32 %v1189, %v1205
        %v1222 = vsub.f32 %v1190, %v1206
        %v1223 = vsub.f32 %v1191, %v1207
        %v1224 = vsub.f32 %v1192, %v1208
        %v1225 = vsub.f32 %v1193, %v1209
        %v1226 = vsub.f32 %v1194, %v1210
        %v1227 = vsub.f32 %v1195, %v1211
        %v1228 = vsub.f32 %v1196, %v1212
        %v1229 = vsub.f32 %v1197, %v1213
        %v1230 = vsub.f32 %v1198, %v1214
        %v1231 = vsub.f32 %v1199, %v1215
        %v1232 = vsub.f32 %v1200, %v1216
        %v1233 = vsub.f32 %v1201, %v1217
        %v1234 = vsub.f32 %v1202, %v1218
        %v1235 = vsub.f32 %v1203, %v1219
        %v1236 = vmul.f32 %v1220, 1.442695
        %v1237 = vpow.pop %v1236
        %v1238 = vmul.f32 %v1221, 1.442695
        %v1239 = vpow.pop %v1238
        %v1240 = vmul.f32 %v1222, 1.442695
        %v1241 = vpow.pop %v1240
        %v1242 = vmul.f32 %v1223, 1.442695
        %v1243 = vpow.pop %v1242
        %v1244 = vmul.f32 %v1224, 1.442695
        %v1245 = vpow.pop %v1244
        %v1246 = vmul.f32 %v1225, 1.442695
        %v1247 = vpow.pop %v1246
        %v1248 = vmul.f32 %v1226, 1.442695
        %v1249 = vpow.pop %v1248
        %v1250 = vmul.f32 %v1227, 1.442695
        %v1251 = vpow.pop %v1250
        %v1252 = vmul.f32 %v1228, 1.442695
        %v1253 = vpow.pop %v1252
        %v1254 = vmul.f32 %v1229, 1.442695
        %v1255 = vpow.pop %v1254
        %v1256 = vmul.f32 %v1230, 1.442695
        %v1257 = vpow.pop %v1256
        %v1258 = vmul.f32 %v1231, 1.442695
        %v1259 = vpow.pop %v1258
        %v1260 = vmul.f32 %v1232, 1.442695
        %v1261 = vpow.pop %v1260
        %v1262 = vmul.f32 %v1233, 1.442695
        %v1263 = vpow.pop %v1262
        %v1264 = vmul.f32 %v1234, 1.442695
        %v1265 = vpow.pop %v1264
        %v1266 = vmul.f32 %v1235, 1.442695
        %v1267 = vpow.pop %v1266
        %v1268 = vld [vmem:[#allocation4] sm:$0xff]
        %v1269 = vld [vmem:[#allocation4 + $0x8] sm:$0xff]
        %v1270 = vld [vmem:[#allocation4 + $0x10] sm:$0xff]
        %v1271 = vld [vmem:[#allocation4 + $0x18] sm:$0xff]
        %v1272 = vld [vmem:[#allocation4 + $0x20] sm:$0xff]
        %v1273 = vld [vmem:[#allocation4 + $0x28] sm:$0xff]
        %v1274 = vld [vmem:[#allocation4 + $0x30] sm:$0xff]
        %v1275 = vld [vmem:[#allocation4 + $0x38] sm:$0xff]
        %v1276 = vld [vmem:[#allocation4 + $0x40] sm:$0xff]
        %v1277 = vld [vmem:[#allocation4 + $0x48] sm:$0xff]
        %v1278 = vld [vmem:[#allocation4 + $0x50] sm:$0xff]
        %v1279 = vld [vmem:[#allocation4 + $0x58] sm:$0xff]
        %v1280 = vld [vmem:[#allocation4 + $0x60] sm:$0xff]
        %v1281 = vld [vmem:[#allocation4 + $0x68] sm:$0xff]
        %v1282 = vld [vmem:[#allocation4 + $0x70] sm:$0xff]
        %v1283 = vld [vmem:[#allocation4 + $0x78] sm:$0xff]
        %v1284 = vmul.f32 %v1237, %v1268
        %v1285 = vmul.f32 %v1239, %v1269
        %v1286 = vmul.f32 %v1241, %v1270
        %v1287 = vmul.f32 %v1243, %v1271
        %v1288 = vmul.f32 %v1245, %v1272
        %v1289 = vmul.f32 %v1247, %v1273
        %v1290 = vmul.f32 %v1249, %v1274
        %v1291 = vmul.f32 %v1251, %v1275
        %v1292 = vmul.f32 %v1253, %v1276
        %v1293 = vmul.f32 %v1255, %v1277
        %v1294 = vmul.f32 %v1257, %v1278
        %v1295 = vmul.f32 %v1259, %v1279
        %v1296 = vmul.f32 %v1261, %v1280
        %v1297 = vmul.f32 %v1263, %v1281
        %v1298 = vmul.f32 %v1265, %v1282
        %v1299 = vmul.f32 %v1267, %v1283
        %1301 = vset.pattern.permute.xlu0 0
        %1302 = vperm.xlu0 %1301, %v1204
        %v1303 = vpop.permute.xlu0 %1302
        %1306 = vset.pattern.permute.xlu0 0
        %1307 = vperm.xlu0 %1306, %v1205
        %v1308 = vpop.permute.xlu0 %1307
        %1311 = vset.pattern.permute.xlu0 0
        %1312 = vperm.xlu0 %1311, %v1206
        %v1313 = vpop.permute.xlu0 %1312
        %1316 = vset.pattern.permute.xlu0 0
        %1317 = vperm.xlu0 %1316, %v1207
        %v1318 = vpop.permute.xlu0 %1317
        %1321 = vset.pattern.permute.xlu0 0
        %1322 = vperm.xlu0 %1321, %v1208
        %v1323 = vpop.permute.xlu0 %1322
        %1326 = vset.pattern.permute.xlu0 0
        %1327 = vperm.xlu0 %1326, %v1209
        %v1328 = vpop.permute.xlu0 %1327
        %1331 = vset.pattern.permute.xlu0 0
        %1332 = vperm.xlu0 %1331, %v1210
        %v1333 = vpop.permute.xlu0 %1332
        %1336 = vset.pattern.permute.xlu0 0
        %1337 = vperm.xlu0 %1336, %v1211
        %v1338 = vpop.permute.xlu0 %1337
        %1341 = vset.pattern.permute.xlu0 0
        %1342 = vperm.xlu0 %1341, %v1212
        %v1343 = vpop.permute.xlu0 %1342
        %1346 = vset.pattern.permute.xlu0 0
        %1347 = vperm.xlu0 %1346, %v1213
        %v1348 = vpop.permute.xlu0 %1347
        %1351 = vset.pattern.permute.xlu0 0
        %1352 = vperm.xlu0 %1351, %v1214
        %v1353 = vpop.permute.xlu0 %1352
        %1356 = vset.pattern.permute.xlu0 0
        %1357 = vperm.xlu0 %1356, %v1215
        %v1358 = vpop.permute.xlu0 %1357
        %1361 = vset.pattern.permute.xlu0 0
        %1362 = vperm.xlu0 %1361, %v1216
        %v1363 = vpop.permute.xlu0 %1362
        %1366 = vset.pattern.permute.xlu0 0
        %1367 = vperm.xlu0 %1366, %v1217
        %v1368 = vpop.permute.xlu0 %1367
        %1371 = vset.pattern.permute.xlu0 0
        %1372 = vperm.xlu0 %1371, %v1218
        %v1373 = vpop.permute.xlu0 %1372
        %1376 = vset.pattern.permute.xlu0 0
        %1377 = vperm.xlu0 %1376, %v1219
        %v1378 = vpop.permute.xlu0 %1377
        %v1380 = vsub.f32 %v1140, %v1303
        %v1381 = vsub.f32 %v1141, %v1308
        %v1382 = vsub.f32 %v1142, %v1313
        %v1383 = vsub.f32 %v1143, %v1318
        %v1384 = vsub.f32 %v1144, %v1323
        %v1385 = vsub.f32 %v1145, %v1328
        %v1386 = vsub.f32 %v1146, %v1333
        %v1387 = vsub.f32 %v1147, %v1338
        %v1388 = vsub.f32 %v1148, %v1343
        %v1389 = vsub.f32 %v1149, %v1348
        %v1390 = vsub.f32 %v1150, %v1353
        %v1391 = vsub.f32 %v1151, %v1358
        %v1392 = vsub.f32 %v1152, %v1363
        %v1393 = vsub.f32 %v1153, %v1368
        %v1394 = vsub.f32 %v1154, %v1373
        %v1395 = vsub.f32 %v1155, %v1378
        %v1396 = vmul.f32 %v1380, 1.442695
        %v1397 = vpow.pop %v1396
        %v1398 = vmul.f32 %v1381, 1.442695
        %v1399 = vpow.pop %v1398
        %v1400 = vmul.f32 %v1382, 1.442695
        %v1401 = vpow.pop %v1400
        %v1402 = vmul.f32 %v1383, 1.442695
        %v1403 = vpow.pop %v1402
        %v1404 = vmul.f32 %v1384, 1.442695
        %v1405 = vpow.pop %v1404
        %v1406 = vmul.f32 %v1385, 1.442695
        %v1407 = vpow.pop %v1406
        %v1408 = vmul.f32 %v1386, 1.442695
        %v1409 = vpow.pop %v1408
        %v1410 = vmul.f32 %v1387, 1.442695
        %v1411 = vpow.pop %v1410
        %v1412 = vmul.f32 %v1388, 1.442695
        %v1413 = vpow.pop %v1412
        %v1414 = vmul.f32 %v1389, 1.442695
        %v1415 = vpow.pop %v1414
        %v1416 = vmul.f32 %v1390, 1.442695
        %v1417 = vpow.pop %v1416
        %v1418 = vmul.f32 %v1391, 1.442695
        %v1419 = vpow.pop %v1418
        %v1420 = vmul.f32 %v1392, 1.442695
        %v1421 = vpow.pop %v1420
        %v1422 = vmul.f32 %v1393, 1.442695
        %v1423 = vpow.pop %v1422
        %v1424 = vmul.f32 %v1394, 1.442695
        %v1425 = vpow.pop %v1424
        %v1426 = vmul.f32 %v1395, 1.442695
        %v1427 = vpow.pop %v1426
        %1428 = vadd.xlane.f32.xlu0 %v1397
        %v1429 = vpop.xlane.xlu0 %1428
        %1430 = vadd.xlane.f32.xlu0 %v1399
        %v1431 = vpop.xlane.xlu0 %1430
        %1432 = vadd.xlane.f32.xlu0 %v1401
        %v1433 = vpop.xlane.xlu0 %1432
        %1434 = vadd.xlane.f32.xlu0 %v1403
        %v1435 = vpop.xlane.xlu0 %1434
        %1436 = vadd.xlane.f32.xlu0 %v1405
        %v1437 = vpop.xlane.xlu0 %1436
        %1438 = vadd.xlane.f32.xlu0 %v1407
        %v1439 = vpop.xlane.xlu0 %1438
        %1440 = vadd.xlane.f32.xlu0 %v1409
        %v1441 = vpop.xlane.xlu0 %1440
        %1442 = vadd.xlane.f32.xlu0 %v1411
        %v1443 = vpop.xlane.xlu0 %1442
        %1444 = vadd.xlane.f32.xlu0 %v1413
        %v1445 = vpop.xlane.xlu0 %1444
        %1446 = vadd.xlane.f32.xlu0 %v1415
        %v1447 = vpop.xlane.xlu0 %1446
        %1448 = vadd.xlane.f32.xlu0 %v1417
        %v1449 = vpop.xlane.xlu0 %1448
        %1450 = vadd.xlane.f32.xlu0 %v1419
        %v1451 = vpop.xlane.xlu0 %1450
        %1452 = vadd.xlane.f32.xlu0 %v1421
        %v1453 = vpop.xlane.xlu0 %1452
        %1454 = vadd.xlane.f32.xlu0 %v1423
        %v1455 = vpop.xlane.xlu0 %1454
        %1456 = vadd.xlane.f32.xlu0 %v1425
        %v1457 = vpop.xlane.xlu0 %1456
        %1458 = vadd.xlane.f32.xlu0 %v1427
        %v1459 = vpop.xlane.xlu0 %1458
        %v1460 = vadd.f32 %v1284, %v1429
        %v1461 = vadd.f32 %v1285, %v1431
        %v1462 = vadd.f32 %v1286, %v1433
        %v1463 = vadd.f32 %v1287, %v1435
        %v1464 = vadd.f32 %v1288, %v1437
        %v1465 = vadd.f32 %v1289, %v1439
        %v1466 = vadd.f32 %v1290, %v1441
        %v1467 = vadd.f32 %v1291, %v1443
        %v1468 = vadd.f32 %v1292, %v1445
        %v1469 = vadd.f32 %v1293, %v1447
        %v1470 = vadd.f32 %v1294, %v1449
        %v1471 = vadd.f32 %v1295, %v1451
        %v1472 = vadd.f32 %v1296, %v1453
        %v1473 = vadd.f32 %v1297, %v1455
        %v1474 = vadd.f32 %v1298, %v1457
        %v1475 = vadd.f32 %v1299, %v1459
        %vm1476 = vcmask 7168
        %1477 = vst.msk [vmem:[#allocation4] sm:$0xff] %vm1476, %v1460
        %1478 = vst.msk [vmem:[#allocation4 + $0x8] sm:$0xff] %vm1476, %v1461
        %1479 = vst.msk [vmem:[#allocation4 + $0x10] sm:$0xff] %vm1476, %v1462
        %1480 = vst.msk [vmem:[#allocation4 + $0x18] sm:$0xff] %vm1476, %v1463
        %1481 = vst.msk [vmem:[#allocation4 + $0x20] sm:$0xff] %vm1476, %v1464
        %1482 = vst.msk [vmem:[#allocation4 + $0x28] sm:$0xff] %vm1476, %v1465
        %1483 = vst.msk [vmem:[#allocation4 + $0x30] sm:$0xff] %vm1476, %v1466
        %1484 = vst.msk [vmem:[#allocation4 + $0x38] sm:$0xff] %vm1476, %v1467
        %1485 = vst.msk [vmem:[#allocation4 + $0x40] sm:$0xff] %vm1476, %v1468
        %1486 = vst.msk [vmem:[#allocation4 + $0x48] sm:$0xff] %vm1476, %v1469
        %1487 = vst.msk [vmem:[#allocation4 + $0x50] sm:$0xff] %vm1476, %v1470
        %1488 = vst.msk [vmem:[#allocation4 + $0x58] sm:$0xff] %vm1476, %v1471
        %1489 = vst.msk [vmem:[#allocation4 + $0x60] sm:$0xff] %vm1476, %v1472
        %1490 = vst.msk [vmem:[#allocation4 + $0x68] sm:$0xff] %vm1476, %v1473
        %1491 = vst.msk [vmem:[#allocation4 + $0x70] sm:$0xff] %vm1476, %v1474
        %1492 = vst.msk [vmem:[#allocation4 + $0x78] sm:$0xff] %vm1476, %v1475
        %1493 = vst.msk [vmem:[#allocation3] sm:$0xff] %vm1476, %v1204
        %1494 = vst.msk [vmem:[#allocation3 + $0x8] sm:$0xff] %vm1476, %v1205
        %1495 = vst.msk [vmem:[#allocation3 + $0x10] sm:$0xff] %vm1476, %v1206
        %1496 = vst.msk [vmem:[#allocation3 + $0x18] sm:$0xff] %vm1476, %v1207
        %1497 = vst.msk [vmem:[#allocation3 + $0x20] sm:$0xff] %vm1476, %v1208
        %1498 = vst.msk [vmem:[#allocation3 + $0x28] sm:$0xff] %vm1476, %v1209
        %1499 = vst.msk [vmem:[#allocation3 + $0x30] sm:$0xff] %vm1476, %v1210
        %1500 = vst.msk [vmem:[#allocation3 + $0x38] sm:$0xff] %vm1476, %v1211
        %1501 = vst.msk [vmem:[#allocation3 + $0x40] sm:$0xff] %vm1476, %v1212
        %1502 = vst.msk [vmem:[#allocation3 + $0x48] sm:$0xff] %vm1476, %v1213
        %1503 = vst.msk [vmem:[#allocation3 + $0x50] sm:$0xff] %vm1476, %v1214
        %1504 = vst.msk [vmem:[#allocation3 + $0x58] sm:$0xff] %vm1476, %v1215
        %1505 = vst.msk [vmem:[#allocation3 + $0x60] sm:$0xff] %vm1476, %v1216
        %1506 = vst.msk [vmem:[#allocation3 + $0x68] sm:$0xff] %vm1476, %v1217
        %1507 = vst.msk [vmem:[#allocation3 + $0x70] sm:$0xff] %vm1476, %v1218
        %1508 = vst.msk [vmem:[#allocation3 + $0x78] sm:$0xff] %vm1476, %v1219
        %v1509 = vld [vmem:[#allocation5] sm:$0xff]
        %v1510 = vld [vmem:[#allocation5 + $0x8] sm:$0xff]
        %v1511 = vld [vmem:[#allocation5 + $0x10] sm:$0xff]
        %v1512 = vld [vmem:[#allocation5 + $0x18] sm:$0xff]
        %v1513 = vld [vmem:[#allocation5 + $0x20] sm:$0xff]
        %v1514 = vld [vmem:[#allocation5 + $0x28] sm:$0xff]
        %v1515 = vld [vmem:[#allocation5 + $0x30] sm:$0xff]
        %v1516 = vld [vmem:[#allocation5 + $0x38] sm:$0xff]
        %v1517 = vld [vmem:[#allocation5 + $0x40] sm:$0xff]
        %v1518 = vld [vmem:[#allocation5 + $0x48] sm:$0xff]
        %v1519 = vld [vmem:[#allocation5 + $0x50] sm:$0xff]
        %v1520 = vld [vmem:[#allocation5 + $0x58] sm:$0xff]
        %v1521 = vld [vmem:[#allocation5 + $0x60] sm:$0xff]
        %v1522 = vld [vmem:[#allocation5 + $0x68] sm:$0xff]
        %v1523 = vld [vmem:[#allocation5 + $0x70] sm:$0xff]
        %v1524 = vld [vmem:[#allocation5 + $0x78] sm:$0xff]
        %vm1525 = vcmp.eq.s32.totalorder %v1101, %v1121
        %vm1526 = vcmp.eq.s32.totalorder %v1101, %v1122
        %vm1527 = vcmp.eq.s32.totalorder %v1101, %v1123
        %vm1528 = vcmp.eq.s32.totalorder %v1101, %v1124
        %vm1529 = vcmp.eq.s32.totalorder %v1101, %v1125
        %vm1530 = vcmp.eq.s32.totalorder %v1101, %v1126
        %vm1531 = vcmp.eq.s32.totalorder %v1101, %v1127
        %vm1532 = vcmp.eq.s32.totalorder %v1101, %v1128
        %vm1533 = vcmp.eq.s32.totalorder %v1101, %v1129
        %vm1534 = vcmp.eq.s32.totalorder %v1101, %v1130
        %vm1535 = vcmp.eq.s32.totalorder %v1101, %v1131
        %vm1536 = vcmp.eq.s32.totalorder %v1101, %v1132
        %vm1537 = vcmp.eq.s32.totalorder %v1101, %v1133
        %vm1538 = vcmp.eq.s32.totalorder %v1101, %v1134
        %vm1539 = vcmp.eq.s32.totalorder %v1101, %v1135
        %vm1540 = vcmp.eq.s32.totalorder %v1101, %v1136
        %v1541 = vsel %vm1525, %v1140, 0.0
        %v1542 = vsel %vm1526, %v1141, 0.0
        %v1543 = vsel %vm1527, %v1142, 0.0
        %v1544 = vsel %vm1528, %v1143, 0.0
        %v1545 = vsel %vm1529, %v1144, 0.0
        %v1546 = vsel %vm1530, %v1145, 0.0
        %v1547 = vsel %vm1531, %v1146, 0.0
        %v1548 = vsel %vm1532, %v1147, 0.0
        %v1549 = vsel %vm1533, %v1148, 0.0
        %v1550 = vsel %vm1534, %v1149, 0.0
        %v1551 = vsel %vm1535, %v1150, 0.0
        %v1552 = vsel %vm1536, %v1151, 0.0
        %v1553 = vsel %vm1537, %v1152, 0.0
        %v1554 = vsel %vm1538, %v1153, 0.0
        %v1555 = vsel %vm1539, %v1154, 0.0
        %v1556 = vsel %vm1540, %v1155, 0.0
        %1557 = vadd.xlane.f32.xlu0 %v1541
        %v1558 = vpop.xlane.xlu0 %1557
        %1559 = vadd.xlane.f32.xlu0 %v1542
        %v1560 = vpop.xlane.xlu0 %1559
        %1561 = vadd.xlane.f32.xlu0 %v1543
        %v1562 = vpop.xlane.xlu0 %1561
        %1563 = vadd.xlane.f32.xlu0 %v1544
        %v1564 = vpop.xlane.xlu0 %1563
        %1565 = vadd.xlane.f32.xlu0 %v1545
        %v1566 = vpop.xlane.xlu0 %1565
        %1567 = vadd.xlane.f32.xlu0 %v1546
        %v1568 = vpop.xlane.xlu0 %1567
        %1569 = vadd.xlane.f32.xlu0 %v1547
        %v1570 = vpop.xlane.xlu0 %1569
        %1571 = vadd.xlane.f32.xlu0 %v1548
        %v1572 = vpop.xlane.xlu0 %1571
        %1573 = vadd.xlane.f32.xlu0 %v1549
        %v1574 = vpop.xlane.xlu0 %1573
        %1575 = vadd.xlane.f32.xlu0 %v1550
        %v1576 = vpop.xlane.xlu0 %1575
        %1577 = vadd.xlane.f32.xlu0 %v1551
        %v1578 = vpop.xlane.xlu0 %1577
        %1579 = vadd.xlane.f32.xlu0 %v1552
        %v1580 = vpop.xlane.xlu0 %1579
        %1581 = vadd.xlane.f32.xlu0 %v1553
        %v1582 = vpop.xlane.xlu0 %1581
        %1583 = vadd.xlane.f32.xlu0 %v1554
        %v1584 = vpop.xlane.xlu0 %1583
        %1585 = vadd.xlane.f32.xlu0 %v1555
        %v1586 = vpop.xlane.xlu0 %1585
        %1587 = vadd.xlane.f32.xlu0 %v1556
        %v1588 = vpop.xlane.xlu0 %1587
        %v1589 = vadd.f32 %v1509, %v1558
        %v1590 = vadd.f32 %v1510, %v1560
        %v1591 = vadd.f32 %v1511, %v1562
        %v1592 = vadd.f32 %v1512, %v1564
        %v1593 = vadd.f32 %v1513, %v1566
        %v1594 = vadd.f32 %v1514, %v1568
        %v1595 = vadd.f32 %v1515, %v1570
        %v1596 = vadd.f32 %v1516, %v1572
        %v1597 = vadd.f32 %v1517, %v1574
        %v1598 = vadd.f32 %v1518, %v1576
        %v1599 = vadd.f32 %v1519, %v1578
        %v1600 = vadd.f32 %v1520, %v1580
        %v1601 = vadd.f32 %v1521, %v1582
        %v1602 = vadd.f32 %v1522, %v1584
        %v1603 = vadd.f32 %v1523, %v1586
        %v1604 = vadd.f32 %v1524, %v1588
        %1605 = vst.msk [vmem:[#allocation5] sm:$0xff] %vm1476, %v1589
        %1606 = vst.msk [vmem:[#allocation5 + $0x8] sm:$0xff] %vm1476, %v1590
        %1607 = vst.msk [vmem:[#allocation5 + $0x10] sm:$0xff] %vm1476, %v1591
        %1608 = vst.msk [vmem:[#allocation5 + $0x18] sm:$0xff] %vm1476, %v1592
        %1609 = vst.msk [vmem:[#allocation5 + $0x20] sm:$0xff] %vm1476, %v1593
        %1610 = vst.msk [vmem:[#allocation5 + $0x28] sm:$0xff] %vm1476, %v1594
        %1611 = vst.msk [vmem:[#allocation5 + $0x30] sm:$0xff] %vm1476, %v1595
        %1612 = vst.msk [vmem:[#allocation5 + $0x38] sm:$0xff] %vm1476, %v1596
        %1613 = vst.msk [vmem:[#allocation5 + $0x40] sm:$0xff] %vm1476, %v1597
        %1614 = vst.msk [vmem:[#allocation5 + $0x48] sm:$0xff] %vm1476, %v1598
        %1615 = vst.msk [vmem:[#allocation5 + $0x50] sm:$0xff] %vm1476, %v1599
        %1616 = vst.msk [vmem:[#allocation5 + $0x58] sm:$0xff] %vm1476, %v1600
        %1617 = vst.msk [vmem:[#allocation5 + $0x60] sm:$0xff] %vm1476, %v1601
        %1618 = vst.msk [vmem:[#allocation5 + $0x68] sm:$0xff] %vm1476, %v1602
        %1619 = vst.msk [vmem:[#allocation5 + $0x70] sm:$0xff] %vm1476, %v1603
        %1620 = vst.msk [vmem:[#allocation5 + $0x78] sm:$0xff] %vm1476, %v1604
        // Predicated region
        $region57: #{tpu_custom_call.1} parent=39 // pred_check
          %p1621 = pneg %p424
        $region58: #{tpu_custom_call.1} parent=39 // pred_check_branch
          %1623 = sbr.rel (%p1621) target = $region60
        $region59: #{tpu_custom_call.1} parent=39 // pred_region
          %v1624 = vld [vmem:[#allocation4] sm:$0xff]
          %v1625 = vld [vmem:[#allocation4 + $0x8] sm:$0xff]
          %v1626 = vld [vmem:[#allocation4 + $0x10] sm:$0xff]
          %v1627 = vld [vmem:[#allocation4 + $0x18] sm:$0xff]
          %v1628 = vld [vmem:[#allocation4 + $0x20] sm:$0xff]
          %v1629 = vld [vmem:[#allocation4 + $0x28] sm:$0xff]
          %v1630 = vld [vmem:[#allocation4 + $0x30] sm:$0xff]
          %v1631 = vld [vmem:[#allocation4 + $0x38] sm:$0xff]
          %v1632 = vld [vmem:[#allocation4 + $0x40] sm:$0xff]
          %v1633 = vld [vmem:[#allocation4 + $0x48] sm:$0xff]
          %v1634 = vld [vmem:[#allocation4 + $0x50] sm:$0xff]
          %v1635 = vld [vmem:[#allocation4 + $0x58] sm:$0xff]
          %v1636 = vld [vmem:[#allocation4 + $0x60] sm:$0xff]
          %v1637 = vld [vmem:[#allocation4 + $0x68] sm:$0xff]
          %v1638 = vld [vmem:[#allocation4 + $0x70] sm:$0xff]
          %v1639 = vld [vmem:[#allocation4 + $0x78] sm:$0xff]
          %v1640 = vlog2.pop %v1624
          %v1641 = vmul.f32 %v1640, 0.6931472
          %v1642 = vlog2.pop %v1625
          %v1643 = vmul.f32 %v1642, 0.6931472
          %v1644 = vlog2.pop %v1626
          %v1645 = vmul.f32 %v1644, 0.6931472
          %v1646 = vlog2.pop %v1627
          %v1647 = vmul.f32 %v1646, 0.6931472
          %v1648 = vlog2.pop %v1628
          %v1649 = vmul.f32 %v1648, 0.6931472
          %v1650 = vlog2.pop %v1629
          %v1651 = vmul.f32 %v1650, 0.6931472
          %v1652 = vlog2.pop %v1630
          %v1653 = vmul.f32 %v1652, 0.6931472
          %v1654 = vlog2.pop %v1631
          %v1655 = vmul.f32 %v1654, 0.6931472
          %v1656 = vlog2.pop %v1632
          %v1657 = vmul.f32 %v1656, 0.6931472
          %v1658 = vlog2.pop %v1633
          %v1659 = vmul.f32 %v1658, 0.6931472
          %v1660 = vlog2.pop %v1634
          %v1661 = vmul.f32 %v1660, 0.6931472
          %v1662 = vlog2.pop %v1635
          %v1663 = vmul.f32 %v1662, 0.6931472
          %v1664 = vlog2.pop %v1636
          %v1665 = vmul.f32 %v1664, 0.6931472
          %v1666 = vlog2.pop %v1637
          %v1667 = vmul.f32 %v1666, 0.6931472
          %v1668 = vlog2.pop %v1638
          %v1669 = vmul.f32 %v1668, 0.6931472
          %v1670 = vlog2.pop %v1639
          %v1671 = vmul.f32 %v1670, 0.6931472
          %v1672 = vld [vmem:[#allocation3] sm:$0xff]
          %v1673 = vld [vmem:[#allocation3 + $0x8] sm:$0xff]
          %v1674 = vld [vmem:[#allocation3 + $0x10] sm:$0xff]
          %v1675 = vld [vmem:[#allocation3 + $0x18] sm:$0xff]
          %v1676 = vld [vmem:[#allocation3 + $0x20] sm:$0xff]
          %v1677 = vld [vmem:[#allocation3 + $0x28] sm:$0xff]
          %v1678 = vld [vmem:[#allocation3 + $0x30] sm:$0xff]
          %v1679 = vld [vmem:[#allocation3 + $0x38] sm:$0xff]
          %v1680 = vld [vmem:[#allocation3 + $0x40] sm:$0xff]
          %v1681 = vld [vmem:[#allocation3 + $0x48] sm:$0xff]
          %v1682 = vld [vmem:[#allocation3 + $0x50] sm:$0xff]
          %v1683 = vld [vmem:[#allocation3 + $0x58] sm:$0xff]
          %v1684 = vld [vmem:[#allocation3 + $0x60] sm:$0xff]
          %v1685 = vld [vmem:[#allocation3 + $0x68] sm:$0xff]
          %v1686 = vld [vmem:[#allocation3 + $0x70] sm:$0xff]
          %v1687 = vld [vmem:[#allocation3 + $0x78] sm:$0xff]
          %v1688 = vadd.f32 %v1641, %v1672
          %v1689 = vadd.f32 %v1643, %v1673
          %v1690 = vadd.f32 %v1645, %v1674
          %v1691 = vadd.f32 %v1647, %v1675
          %v1692 = vadd.f32 %v1649, %v1676
          %v1693 = vadd.f32 %v1651, %v1677
          %v1694 = vadd.f32 %v1653, %v1678
          %v1695 = vadd.f32 %v1655, %v1679
          %v1696 = vadd.f32 %v1657, %v1680
          %v1697 = vadd.f32 %v1659, %v1681
          %v1698 = vadd.f32 %v1661, %v1682
          %v1699 = vadd.f32 %v1663, %v1683
          %v1700 = vadd.f32 %v1665, %v1684
          %v1701 = vadd.f32 %v1667, %v1685
          %v1702 = vadd.f32 %v1669, %v1686
          %v1703 = vadd.f32 %v1671, %v1687
          %v1704 = vld [vmem:[#allocation5] sm:$0xff]
          %v1705 = vld [vmem:[#allocation5 + $0x8] sm:$0xff]
          %v1706 = vld [vmem:[#allocation5 + $0x10] sm:$0xff]
          %v1707 = vld [vmem:[#allocation5 + $0x18] sm:$0xff]
          %v1708 = vld [vmem:[#allocation5 + $0x20] sm:$0xff]
          %v1709 = vld [vmem:[#allocation5 + $0x28] sm:$0xff]
          %v1710 = vld [vmem:[#allocation5 + $0x30] sm:$0xff]
          %v1711 = vld [vmem:[#allocation5 + $0x38] sm:$0xff]
          %v1712 = vld [vmem:[#allocation5 + $0x40] sm:$0xff]
          %v1713 = vld [vmem:[#allocation5 + $0x48] sm:$0xff]
          %v1714 = vld [vmem:[#allocation5 + $0x50] sm:$0xff]
          %v1715 = vld [vmem:[#allocation5 + $0x58] sm:$0xff]
          %v1716 = vld [vmem:[#allocation5 + $0x60] sm:$0xff]
          %v1717 = vld [vmem:[#allocation5 + $0x68] sm:$0xff]
          %v1718 = vld [vmem:[#allocation5 + $0x70] sm:$0xff]
          %v1719 = vld [vmem:[#allocation5 + $0x78] sm:$0xff]
          %v1720 = vsub.f32 %v1688, %v1704
          %v1721 = vsub.f32 %v1689, %v1705
          %v1722 = vsub.f32 %v1690, %v1706
          %v1723 = vsub.f32 %v1691, %v1707
          %v1724 = vsub.f32 %v1692, %v1708
          %v1725 = vsub.f32 %v1693, %v1709
          %v1726 = vsub.f32 %v1694, %v1710
          %v1727 = vsub.f32 %v1695, %v1711
          %v1728 = vsub.f32 %v1696, %v1712
          %v1729 = vsub.f32 %v1697, %v1713
          %v1730 = vsub.f32 %v1698, %v1714
          %v1731 = vsub.f32 %v1699, %v1715
          %v1732 = vsub.f32 %v1700, %v1716
          %v1733 = vsub.f32 %v1701, %v1717
          %v1734 = vsub.f32 %v1702, %v1718
          %v1735 = vsub.f32 %v1703, %v1719
          %1736 = vst.msk [vmem:[%s420] sm:$0xff] %vm1476, %v1720
          %1737 = vst.msk [vmem:[%s420 + $0x8] sm:$0xff] %vm1476, %v1721
          %1738 = vst.msk [vmem:[%s420 + $0x10] sm:$0xff] %vm1476, %v1722
          %1739 = vst.msk [vmem:[%s420 + $0x18] sm:$0xff] %vm1476, %v1723
          %1740 = vst.msk [vmem:[%s420 + $0x20] sm:$0xff] %vm1476, %v1724
          %1741 = vst.msk [vmem:[%s420 + $0x28] sm:$0xff] %vm1476, %v1725
          %1742 = vst.msk [vmem:[%s420 + $0x30] sm:$0xff] %vm1476, %v1726
          %1743 = vst.msk [vmem:[%s420 + $0x38] sm:$0xff] %vm1476, %v1727
          %1744 = vst.msk [vmem:[%s420 + $0x40] sm:$0xff] %vm1476, %v1728
          %1745 = vst.msk [vmem:[%s420 + $0x48] sm:$0xff] %vm1476, %v1729
          %1746 = vst.msk [vmem:[%s420 + $0x50] sm:$0xff] %vm1476, %v1730
          %1747 = vst.msk [vmem:[%s420 + $0x58] sm:$0xff] %vm1476, %v1731
          %1748 = vst.msk [vmem:[%s420 + $0x60] sm:$0xff] %vm1476, %v1732
          %1749 = vst.msk [vmem:[%s420 + $0x68] sm:$0xff] %vm1476, %v1733
          %1750 = vst.msk [vmem:[%s420 + $0x70] sm:$0xff] %vm1476, %v1734
          %1751 = vst.msk [vmem:[%s420 + $0x78] sm:$0xff] %vm1476, %v1735
        $region60: #{tpu_custom_call.1} parent=39 // pred_fallthru
          _
        %s1752 = smul.u32 16, %s47
        %p1753 = scmp.lt.s32.totalorder %s46, 5
        %s1754 = scalar_select %p1753, %s46, 5
        %p1755 = scmp.lt.s32.totalorder %s1752, 15
        %s1756 = scalar_select %p1755, %s1752, 15
        %s1757 = smul.addr %s1754, 16
        %s1758 = sadd.s32 %s1756, %s1757
        %s1759 = smul.addr %s1758, 8
        %s1760 = scalar_lea.vmem %s7, %s1759
        %s1761 = sand.u32 %s226, 1
        %s1762 = scalar_lea.sflag [#allocation13], %s1761
        %s1763 = sand.u32 %s226, 1
        %s1764 = smul.addr %s1763, 64
        %s1765 = scalar_lea.vmem [#allocation17], %s1764
        // Predicated region
        $region61: #{tpu_custom_call.1} parent=39 // pred_check
          %p1766 = pneg %p208
        $region62: #{tpu_custom_call.1} parent=39 // pred_check_branch
          %1768 = sbr.rel (%p1766) target = $region64
        $region63: #{tpu_custom_call.1} parent=39 // pred_region
          %s1769 = smul.u32 16, %s47
        $region64: #{tpu_custom_call.1} parent=39 // pred_fallthru
          _
        // Predicated region
        $region65: #{tpu_custom_call.1} parent=39 // pred_check
          %p1770 = pneg %p236
        $region66: #{tpu_custom_call.1} parent=39 // pred_check_branch
          %1772 = sbr.rel (%p1770) target = $region68
        $region67: #{tpu_custom_call.1} parent=39 // pred_region
          %s1773 = smul.u32 16, %s47
          %s1775 = ssub.s32 1024, 1024
          %1776 = vsyncadd %s1762, %s1775
          %s1777 = smul.addr %s46, 16
          %s1778 = sadd.s32 %s1773, %s1777
          %s1779 = smul.addr %s1778, 64
          %s1780 = scalar_lea.hbm %s8, %s1779
          %s1781 = sshll.u32 %s1765, 4
          %s1782 = int_to_ptr.vmem [resolvable:$true] %s1781
          %1787 = dma.vmem_to_hbm [thread:$0]  %s1782, 1024, %s1780, %s1762, 64, 64, 4
        $region68: #{tpu_custom_call.1} parent=39 // pred_fallthru
          _
      $region40: #{tpu_custom_call.1} parent=5 // pred_fallthru
        _
      %p1788 = scmp.le.s32.totalorder 2, %s36
      // Predicated region
      $region69: #{tpu_custom_call.1} parent=5 // pred_check
        %p1789 = pneg %p1788
      $region70: #{tpu_custom_call.1} parent=5 // pred_check_branch
        %1791 = sbr.rel (%p1789) target = $region72
      $region71: #{tpu_custom_call.1} parent=5 // pred_region
        %s1792 = ssub.s32 %s36, 2
        // Predicated region
        $region73: #{tpu_custom_call.1} parent=71 // pred_check
          %p1793 = pneg %p214
        $region74: #{tpu_custom_call.1} parent=71 // pred_check_branch
          %1795 = sbr.rel (%p1793) target = $region76
        $region75: #{tpu_custom_call.1} parent=71 // pred_region
          %s1796 = smul.u32 16, %s50
          %p1797 = scmp.lt.s32.totalorder %s49, 5
          %s1798 = scalar_select %p1797, %s49, 5
          %p1799 = scmp.lt.s32.totalorder %s1796, 15
          %s1800 = scalar_select %p1799, %s1796, 15
          %s1801 = smul.addr %s1798, 16
          %s1802 = sadd.s32 %s1800, %s1801
          %s1803 = smul.addr %s1802, 8
          %s1804 = scalar_lea.vmem %s7, %s1803
        $region76: #{tpu_custom_call.1} parent=71 // pred_fallthru
          _
        // Predicated region
        $region77: #{tpu_custom_call.1} parent=71 // pred_check
          %p1805 = pneg %p242
        $region78: #{tpu_custom_call.1} parent=71 // pred_check_branch
          %1807 = sbr.rel (%p1805) target = $region80
        $region79: #{tpu_custom_call.1} parent=71 // pred_region
          %s1808 = sand.u32 %s227, 1
          %s1809 = scalar_lea.sflag [#allocation13], %s1808
          %s1810 = sand.u32 %s227, 1
          %s1811 = smul.addr %s1810, 64
          %s1812 = scalar_lea.vmem [#allocation17], %s1811
          %1813 = dma.done %s1809, 1024
        $region80: #{tpu_custom_call.1} parent=71 // pred_fallthru
          _
      $region72: #{tpu_custom_call.1} parent=5 // pred_fallthru
        _
    $region6: #{tpu_custom_call.1} parent=1 // loop_footer
      %s40 = sadd.s32 1, %s36
    $region7: #{tpu_custom_call.1} parent=1 // loop_footer_branch
      %35 = sbr.rel target = $region3
    $region8: #{tpu_custom_call.1} parent=1 // loop_exit
      _
    %1814 = vsyncpa [#allocation12], 1
    %s1815 = scalar_lea.sflag [#allocation12], 1
    %1816 = vsyncpa %s1815, 1
    %1817 = vsyncpa [#allocation15], 1
    %s1818 = scalar_lea.sflag [#allocation15], 1
    %1819 = vsyncpa %s1818, 1
    %1820 = vsyncpa [#allocation13], 1
    %s1821 = scalar_lea.sflag [#allocation13], 1
    %1822 = vsyncpa %s1821, 1

</llo_original>
